<compile_context>
chip_gen: v7x
topology: tpu7x:2x2x1
jax: 0.10.0
libtpu: 0.0.40
codegen_flags: <defaults>
</compile_context>

<pallas_src>
import jax
import jax.numpy as jnp
from jax import lax
from jax.experimental import pallas as pl
from jax.experimental.pallas import tpu as pltpu


def _sigmoid(x):
    # 1 EUP op (tanh) instead of exp + reciprocal.
    return 0.5 * (jnp.tanh(0.5 * x) + 1.0)


def _pick_row_tile(n, max_rows=512):
    """Largest row tile <= max_rows that divides n and is sublane-aligned (or n)."""
    if n <= max_rows:
        return n
    for cand in range(max_rows, 7, -1):
        if n % cand == 0 and cand % 8 == 0:
            return cand
    return n


# ------------------------------------------------------ LSTM kernel 1: input projection
def input_proj_kernel(x_ref, w_ref, b_ref, gx_ref):
    # x_ref: (1, tn, E) bf16, w_ref: (E, 4H) bf16, b_ref: (1, 4H) f32 -> gx (1, tn, 4H) f32
    gx_ref[0] = (jnp.dot(x_ref[0], w_ref[...], preferred_element_type=jnp.float32)
                 + b_ref[...])


# ------------------------------------------------------ LSTM kernel 2: serial recurrence
def lstm_step_kernel(gx_ref, whh_ref, hout_ref, c_scr):
    H = c_scr.shape[1]
    t = pl.program_id(1)

    @pl.when(t == 0)
    def _():
        hout_ref[...] = jnp.zeros_like(hout_ref)
        c_scr[...] = jnp.zeros_like(c_scr)

    h = hout_ref[...]                                                  # (tn, H) f32
    gates = gx_ref[0] + jnp.dot(h.astype(jnp.bfloat16), whh_ref[...],
                                preferred_element_type=jnp.float32)    # (tn, 4H) f32

    # One full-width tanh-sigmoid pass covers i, f, o; tanh for g. Gate order i,f,g,o.
    sig = _sigmoid(gates)
    i = sig[:, 0 * H:1 * H]
    f = sig[:, 1 * H:2 * H]
    o = sig[:, 3 * H:4 * H]
    g = jnp.tanh(gates[:, 2 * H:3 * H])

    c_new = f * c_scr[...] + i * g
    c_scr[...] = c_new
    hout_ref[...] = o * jnp.tanh(c_new)                                # h written in place


def lstm_last(x_lne, wih_bf, whh_bf, b_lstm):
    """x_lne: (L, N, E) time-major bf16. Returns last hidden state (N, H) f32."""
    L, N, E = x_lne.shape
    H4 = wih_bf.shape[1]
    H = H4 // 4
    tn = _pick_row_tile(N)
    n_tiles = N // tn

    # (1) big, fully-parallel input projection (streams x, lane-dense 4H output).
    gates_x = pl.pallas_call(
        input_proj_kernel,
        grid=(n_tiles, L),
        out_shape=jax.ShapeDtypeStruct((L, N, H4), jnp.float32),
        in_specs=[
            pl.BlockSpec((1, tn, E), lambda n, l: (l, n, 0)),
            pl.BlockSpec((E, H4), lambda n, l: (0, 0)),
            pl.BlockSpec((1, H4), lambda n, l: (0, 0)),
        ],
        out_specs=pl.BlockSpec((1, tn, H4), lambda n, l: (l, n, 0)),
        compiler_params=pltpu.CompilerParams(
            dimension_semantics=("parallel", "parallel")),
    )(x_lne, wih_bf, b_lstm)

    # (2) recurrence: gates_x streamed per timestep (default double-buffered pipeline),
    #     N tiles parallel (megacore), L serial; h resident in the output block.
    h_last = pl.pallas_call(
        lstm_step_kernel,
        grid=(n_tiles, L),
        out_shape=jax.ShapeDtypeStruct((N, H), jnp.float32),
        in_specs=[
            pl.BlockSpec((1, tn, H4), lambda n, l: (l, n, 0)),
            pl.BlockSpec((H, H4), lambda n, l: (0, 0)),
        ],
        out_specs=pl.BlockSpec((tn, H), lambda n, l: (n, 0)),
        scratch_shapes=[pltpu.VMEM((tn, H), jnp.float32)],
        compiler_params=pltpu.CompilerParams(
            dimension_semantics=("parallel", "arbitrary")),
    )(gates_x, whh_bf)
    return h_last


# ------------------------------------------------------------------ head kernel (1 program)
def head_kernel(x_ref, u_ref, e_ref, m_ref, seg_ref, segT_ref,
                hw1_ref, hb1_ref, hw2_ref, hb2_ref,
                ewu_ref, ewe_ref, ewl_ref, eb_ref,
                gw_ref, gb_ref, sw_ref, sb_ref,
                out_ref):
    x = x_ref[...]                                                     # (BT, H)   bf16
    u = u_ref[...]                                                     # (BT, 16)  bf16
    e = e_ref[...]                                                     # (BT, Dex) bf16
    m = m_ref[...]                                                     # (BT, 1)   f32
    seg = seg_ref[...]                                                 # (BT, B)   f32
    segT = segT_ref[...]                                               # (B, BT)   f32

    l1 = jnp.maximum(
        jnp.dot(x, hw1_ref[...], preferred_element_type=jnp.float32) + hb1_ref[...], 0.0)
    l1b = l1.astype(jnp.bfloat16)
    out = jnp.maximum(
        jnp.dot(l1b, hw2_ref[...], preferred_element_type=jnp.float32) + hb2_ref[...], 0.0)

    # extraw([user, extra, lstm_out]) split into three matmuls (avoids in-kernel concat)
    ex = jnp.maximum(
        jnp.dot(u, ewu_ref[...], preferred_element_type=jnp.float32)
        + jnp.dot(e, ewe_ref[...], preferred_element_type=jnp.float32)
        + jnp.dot(l1b, ewl_ref[...], preferred_element_type=jnp.float32)
        + eb_ref[...], 0.0)

    logits = (jnp.dot(ex.astype(jnp.bfloat16), gw_ref[...],
                      preferred_element_type=jnp.float32) + gb_ref[...])   # (BT, 1)
    logits = logits + (-100000.0) * (1.0 - m)

    # Per-batch softmax over the T rows of each batch via the segment matrix.
    # Subtracting the global max is valid (it is constant within every batch group).
    gmax = jnp.max(logits, axis=0, keepdims=True)                      # (1, 1)
    p = jnp.exp(logits - gmax)                                         # (BT, 1); masked -> 0
    batch_sum = jnp.dot(segT, p, preferred_element_type=jnp.float32)   # (B, 1)
    denom = jnp.dot(seg, batch_sum, preferred_element_type=jnp.float32)  # (BT, 1)
    gate = p * pl.reciprocal(denom, approx=True)                       # (BT, 1)

    pooled = jnp.dot(segT, out * gate, preferred_element_type=jnp.float32)  # (B, H)
    s = jnp.dot(pooled.astype(jnp.bfloat16), sw_ref[...],
                preferred_element_type=jnp.float32) + sb_ref[...]      # (B, 1)
    out_ref[...] = _sigmoid(s)


def head(h_last, user_emb, extra, maskf, seg, segT, params):
    B = seg.shape[1]
    bf = jnp.bfloat16
    vmem = pl.BlockSpec(memory_space=pltpu.MemorySpace.VMEM)
    args = (
        h_last.astype(bf), user_emb.astype(bf), extra.astype(bf), maskf, seg, segT,
        params["hw1"].astype(bf), params["hb1"],
        params["hw2"].astype(bf), params["hb2"],
        params["ewu"].astype(bf), params["ewe"].astype(bf), params["ewl"].astype(bf),
        params["eb"],
        params["gw"].astype(bf), params["gb"],
        params["sw"].astype(bf), params["sb"],
    )
    return pl.pallas_call(
        head_kernel,
        out_shape=jax.ShapeDtypeStruct((B, 1), jnp.float32),
        in_specs=[vmem] * len(args),
        out_specs=vmem,
    )(*args)


# ------------------------------------------------------------------ full forward
def lstm_model_forward(sentence, user_idx, extra_inpts, mask, params):
    B, T, L = sentence.shape
    E = params["word_emb"].shape[1]
    N = B * T

    # matmul operands in bf16 (f32 accumulation); biases stay f32
    wih_bf = params["wih_t"].astype(jnp.bfloat16)
    whh_bf = params["whh_t"].astype(jnp.bfloat16)

    embeds = jnp.take(params["word_emb"], sentence, axis=0)            # (B, T, L, E)
    x = embeds.reshape(N, L, E).transpose(1, 0, 2).astype(jnp.bfloat16)  # (L, N, E)
    h_last = lstm_last(x, wih_bf, whh_bf, params["b_lstm"])            # (N, H) f32

    user_emb = jnp.take(params["user_emb"], user_idx, axis=0).reshape(N, 16)
    extra_flat = extra_inpts.reshape(N, -1)
    maskf = mask.astype(jnp.float32).reshape(N, 1)
    seg = jnp.repeat(jnp.eye(B, dtype=jnp.float32), T, axis=0)         # (N, B): row -> batch
    segT = seg.T                                                        # (B, N)

    return head(h_last, user_emb, extra_flat, maskf, seg, segT, params)  # (B, 1)


# ------------------------------------------------------------------ pure-JAX reference
def reference_forward(sentence, user_idx, extra_inpts, mask, params):
    B, T, L = sentence.shape
    E = params["word_emb"].shape[1]
    H = params["whh_t"].shape[0]
    embeds = params["word_emb"][sentence]
    x = embeds.reshape(B * T, L, E)
    h = jnp.zeros((B * T, H), jnp.float32)
    c = jnp.zeros((B * T, H), jnp.float32)
    for t in range(L):
        gates = x[:, t] @ params["wih_t"] + h @ params["whh_t"] + params["b_lstm"][0]
        i = _sigmoid(gates[:, :H]); f = _sigmoid(gates[:, H:2 * H])
        g = jnp.tanh(gates[:, 2 * H:3 * H]); o = _sigmoid(gates[:, 3 * H:])
        c = f * c + i * g
        h = o * jnp.tanh(c)
    lstm_out = h.reshape(B, T, H)
    l1 = jax.nn.relu(lstm_out @ params["hw1"] + params["hb1"][0])
    out = jax.nn.relu(l1 @ params["hw2"] + params["hb2"][0])
    user_emb = params["user_emb"][user_idx]
    extras = jnp.concatenate([user_emb, extra_inpts, l1], -1)
    ew = jnp.concatenate([params["ewu"], params["ewe"], params["ewl"]], 0)
    extras = jax.nn.relu(extras @ ew + params["eb"][0])
    logits = (extras @ params["gw"] + params["gb"][0])[:, :, 0]
    logits = logits + (-100000.0) * (1.0 - mask.astype(jnp.float32))
    gate = jax.nn.softmax(logits, axis=1)[..., None]
    pooled = (out * gate).sum(1)
    return _sigmoid(pooled @ params["sw"] + params["sb"][0])


# ------------------------------------------------------------------ params
def init_params(key, vocab_size, user_size, embedding_dim, extra_input_dim, hidden_dim):
    E, H, Dex = embedding_dim, hidden_dim, extra_input_dim
    ks = jax.random.split(key, 16)
    n = lambda k, shape, s=0.1: (s * jax.random.normal(k, shape)).astype(jnp.float32)
    return {
        "word_emb": n(ks[0], (vocab_size, E), 0.5),
        "user_emb": n(ks[1], (user_size, 16), 0.5),
        # LSTM: PyTorch weight_ih (4H,E) / weight_hh (4H,H) stored transposed; gate order i,f,g,o
        "wih_t": n(ks[2], (E, 4 * H)),
        "whh_t": n(ks[3], (H, 4 * H)),
        "b_lstm": n(ks[4], (1, 4 * H)),   # bias_ih + bias_hh combined
        "hw1": n(ks[5], (H, H)), "hb1": n(ks[6], (1, H)),
        "hw2": n(ks[7], (H, H)), "hb2": n(ks[8], (1, H)),
        # extraw split by concat order [user(16), extra(Dex), lstm(H)]
        "ewu": n(ks[9], (16, H)), "ewe": n(ks[10], (Dex, H)), "ewl": n(ks[11], (H, H)),
        "eb": n(ks[12], (1, H)),
        "gw": n(ks[13], (H, 1)), "gb": jnp.zeros((1, 1), jnp.float32),
        "sw": n(ks[14], (H, 1)), "sb": jnp.zeros((1, 1), jnp.float32),
    }


if __name__ == "__main__":
    B, T, L = 2, 4, 8
    E, H, Dex = 32, 32, 8
    vocab_size, user_size = 100, 10

    key = jax.random.PRNGKey(0)
    kp, k1, k2, k3 = jax.random.split(key, 4)
    params = init_params(kp, vocab_size, user_size, E, Dex, H)

    sentence = jax.random.randint(k1, (B, T, L), 0, vocab_size)
    user_idx = jax.random.randint(k2, (B, T), 0, user_size)
    extra_inpts = jax.random.normal(k3, (B, T, Dex), dtype=jnp.float32)
    mask = jnp.array([[1.0, 1.0, 1.0, 1.0],
                      [1.0, 1.0, 0.0, 0.0]], dtype=jnp.float32)

    out = jax.jit(lstm_model_forward)(sentence, user_idx, extra_inpts, mask, params)
    out = jax.block_until_ready(out)

    ref = reference_forward(sentence, user_idx, extra_inpts, mask, params)
    assert out.shape == (B, 1), out.shape
    assert jnp.allclose(out, ref, rtol=1e-2, atol=1e-2), (out, ref)
    print("KERNEL_OK")
</pallas_src>

<mosaic_0001>
module attributes {stable_mosaic.version = 11 : i64} {
  func.func @input_proj_kernel(%arg0: i32, %arg1: i32, %arg2: memref<1x8x32xbf16, #tpu.memory_space<vmem>>, %arg3: memref<32x128xbf16, #tpu.memory_space<vmem>>, %arg4: memref<1x128xf32, #tpu.memory_space<vmem>>, %arg5: memref<1x8x128xf32, #tpu.memory_space<vmem>>) attributes {dimension_semantics = [#tpu.dimension_semantics<parallel>, #tpu.dimension_semantics<parallel>], iteration_bounds = array<i64: 1, 8>, scalar_prefetch = 0 : i64, scratch_operands = 0 : i64, tpu.core_type = #tpu.core_type<tc>, window_params = [{transform_indices = @transform_0, window_bounds = array<i64: 1, 8, 32>}, {pipeline_mode = #tpu.pipeline_mode<synchronous>, transform_indices = @transform_1, window_bounds = array<i64: 32, 128>}, {pipeline_mode = #tpu.pipeline_mode<synchronous>, transform_indices = @transform_2, window_bounds = array<i64: 1, 128>}, {transform_indices = @transform_3, window_bounds = array<i64: 1, 8, 128>}]} {
    %c0 = arith.constant 0 : index
    %c0_0 = arith.constant 0 : index
    %c0_1 = arith.constant 0 : index
    %0 = vector.load %arg2[%c0, %c0_0, %c0_1] : memref<1x8x32xbf16, #tpu.memory_space<vmem>>, vector<1x8x32xbf16>
    %1 = vector.shape_cast %0 : vector<1x8x32xbf16> to vector<8x32xbf16>
    %c0_2 = arith.constant 0 : index
    %c0_3 = arith.constant 0 : index
    %2 = vector.load %arg3[%c0_2, %c0_3] : memref<32x128xbf16, #tpu.memory_space<vmem>>, vector<32x128xbf16>
    %cst = arith.constant dense<0.000000e+00> : vector<8x128xf32>
    %3 = tpu.matmul %1, %2, %cst {dimension_numbers = #tpu.dot_dimension_numbers<[1], [0], [0], [1], [0, 0, 1, 1], [], []>} : vector<8x32xbf16>, vector<32x128xbf16>, vector<8x128xf32> -> vector<8x128xf32>
    %c0_4 = arith.constant 0 : index
    %c0_5 = arith.constant 0 : index
    %4 = vector.load %arg4[%c0_4, %c0_5] : memref<1x128xf32, #tpu.memory_space<vmem>>, vector<1x128xf32>
    %5 = vector.broadcast %4 : vector<1x128xf32> to vector<8x128xf32>
    %6 = arith.addf %3, %5 : vector<8x128xf32>
    %c0_6 = arith.constant 0 : index
    %c0_7 = arith.constant 0 : index
    %c0_8 = arith.constant 0 : index
    %7 = vector.load %arg5[%c0_6, %c0_7, %c0_8] : memref<1x8x128xf32, #tpu.memory_space<vmem>>, vector<1x8x128xf32>
    %8 = vector.shape_cast %7 : vector<1x8x128xf32> to vector<8x128xf32>
    %9 = vector.shape_cast %6 : vector<8x128xf32> to vector<1x8x128xf32>
    tpu.vector_store %arg5[%c0_6, %c0_7, %c0_8], %9 {strides = array<i32>} : memref<1x8x128xf32, #tpu.memory_space<vmem>>, vector<1x8x128xf32>,
    return
  }
  func.func @transform_0(%arg0: i32, %arg1: i32) -> (i32, i32, i32) {
    %c0_i32 = arith.constant 0 : i32
    %c0_i32_0 = arith.constant 0 : i32
    return %arg1, %arg0, %c0_i32 : i32, i32, i32
  }
  func.func @transform_1(%arg0: i32, %arg1: i32) -> (i32, i32) {
    %c0_i32 = arith.constant 0 : i32
    %c0_i32_0 = arith.constant 0 : i32
    %c0_i32_1 = arith.constant 0 : i32
    return %c0_i32, %c0_i32_0 : i32, i32
  }
  func.func @transform_2(%arg0: i32, %arg1: i32) -> (i32, i32) {
    %c0_i32 = arith.constant 0 : i32
    %c0_i32_0 = arith.constant 0 : i32
    %c0_i32_1 = arith.constant 0 : i32
    return %c0_i32, %c0_i32_0 : i32, i32
  }
  func.func @transform_3(%arg0: i32, %arg1: i32) -> (i32, i32, i32) {
    %c0_i32 = arith.constant 0 : i32
    %c0_i32_0 = arith.constant 0 : i32
    return %arg1, %arg0, %c0_i32 : i32, i32, i32
  }
}

module attributes {stable_mosaic.version = 11 : i64} {
  func.func @lstm_step_kernel(%arg0: i32, %arg1: i32, %arg2: memref<1x8x128xf32, #tpu.memory_space<vmem>>, %arg3: memref<32x128xbf16, #tpu.memory_space<vmem>>, %arg4: memref<8x32xf32, #tpu.memory_space<vmem>>, %arg5: memref<8x32xf32, #tpu.memory_space<vmem>>) attributes {dimension_semantics = [#tpu.dimension_semantics<parallel>, #tpu.dimension_semantics<arbitrary>], iteration_bounds = array<i64: 1, 8>, scalar_prefetch = 0 : i64, scratch_operands = 1 : i64, tpu.core_type = #tpu.core_type<tc>, window_params = [{transform_indices = @transform_0, window_bounds = array<i64: 1, 8, 128>}, {pipeline_mode = #tpu.pipeline_mode<synchronous>, transform_indices = @transform_1, window_bounds = array<i64: 32, 128>}, {transform_indices = @transform_2, window_bounds = array<i64: 8, 32>}]} {
    %c0_i32 = arith.constant 0 : i32
    %0 = arith.cmpi eq, %arg1, %c0_i32 : i32
    %1 = arith.extui %0 : i1 to i32
    %c0_i32_0 = arith.constant 0 : i32
    %2 = arith.cmpi ne, %1, %c0_i32_0 : i32
    scf.if %2 {
      %cst_16 = arith.constant 0.000000e+00 : f32
      %30 = vector.broadcast %cst_16 : f32 to vector<8x32xf32>
      %c0_17 = arith.constant 0 : index
      %c0_18 = arith.constant 0 : index
      %31 = vector.load %arg4[%c0_17, %c0_18] : memref<8x32xf32, #tpu.memory_space<vmem>>, vector<8x32xf32>
      tpu.vector_store %arg4[%c0_17, %c0_18], %30 {strides = array<i32>} : memref<8x32xf32, #tpu.memory_space<vmem>>, vector<8x32xf32>,
      %cst_19 = arith.constant 0.000000e+00 : f32
      %32 = vector.broadcast %cst_19 : f32 to vector<8x32xf32>
      %c0_20 = arith.constant 0 : index
      %c0_21 = arith.constant 0 : index
      %33 = vector.load %arg5[%c0_20, %c0_21] : memref<8x32xf32, #tpu.memory_space<vmem>>, vector<8x32xf32>
      tpu.vector_store %arg5[%c0_20, %c0_21], %32 {strides = array<i32>} : memref<8x32xf32, #tpu.memory_space<vmem>>, vector<8x32xf32>,
    } else {
    }
    %c0 = arith.constant 0 : index
    %c0_1 = arith.constant 0 : index
    %3 = vector.load %arg4[%c0, %c0_1] : memref<8x32xf32, #tpu.memory_space<vmem>>, vector<8x32xf32>
    %c0_2 = arith.constant 0 : index
    %c0_3 = arith.constant 0 : index
    %c0_4 = arith.constant 0 : index
    %4 = vector.load %arg2[%c0_2, %c0_3, %c0_4] : memref<1x8x128xf32, #tpu.memory_space<vmem>>, vector<1x8x128xf32>
    %5 = vector.shape_cast %4 : vector<1x8x128xf32> to vector<8x128xf32>
    %6 = arith.truncf %3 : vector<8x32xf32> to vector<8x32xbf16>
    %c0_5 = arith.constant 0 : index
    %c0_6 = arith.constant 0 : index
    %7 = vector.load %arg3[%c0_5, %c0_6] : memref<32x128xbf16, #tpu.memory_space<vmem>>, vector<32x128xbf16>
    %cst = arith.constant dense<0.000000e+00> : vector<8x128xf32>
    %8 = tpu.matmul %6, %7, %cst {dimension_numbers = #tpu.dot_dimension_numbers<[1], [0], [0], [1], [0, 0, 1, 1], [], []>} : vector<8x32xbf16>, vector<32x128xbf16>, vector<8x128xf32> -> vector<8x128xf32>
    %9 = arith.addf %5, %8 : vector<8x128xf32>
    %cst_7 = arith.constant 5.000000e-01 : f32
    %10 = vector.broadcast %cst_7 : f32 to vector<8x128xf32>
    %11 = arith.mulf %10, %9 : vector<8x128xf32>
    %12 = math.tanh %11 : vector<8x128xf32>
    %cst_8 = arith.constant 1.000000e+00 : f32
    %13 = vector.broadcast %cst_8 : f32 to vector<8x128xf32>
    %14 = arith.addf %12, %13 : vector<8x128xf32>
    %cst_9 = arith.constant 5.000000e-01 : f32
    %15 = vector.broadcast %cst_9 : f32 to vector<8x128xf32>
    %16 = arith.mulf %15, %14 : vector<8x128xf32>
    %17 = vector.extract_strided_slice %16 {offsets = [0, 0], sizes = [8, 32], strides = [1, 1]} : vector<8x128xf32> to vector<8x32xf32>
    %18 = vector.extract_strided_slice %16 {offsets = [0, 32], sizes = [8, 32], strides = [1, 1]} : vector<8x128xf32> to vector<8x32xf32>
    %19 = vector.extract_strided_slice %16 {offsets = [0, 96], sizes = [8, 32], strides = [1, 1]} : vector<8x128xf32> to vector<8x32xf32>
    %20 = vector.extract_strided_slice %9 {offsets = [0, 64], sizes = [8, 32], strides = [1, 1]} : vector<8x128xf32> to vector<8x32xf32>
    %21 = math.tanh %20 : vector<8x32xf32>
    %c0_10 = arith.constant 0 : index
    %c0_11 = arith.constant 0 : index
    %22 = vector.load %arg5[%c0_10, %c0_11] : memref<8x32xf32, #tpu.memory_space<vmem>>, vector<8x32xf32>
    %23 = arith.mulf %18, %22 : vector<8x32xf32>
    %24 = arith.mulf %17, %21 : vector<8x32xf32>
    %25 = arith.addf %23, %24 : vector<8x32xf32>
    %c0_12 = arith.constant 0 : index
    %c0_13 = arith.constant 0 : index
    %26 = vector.load %arg5[%c0_12, %c0_13] : memref<8x32xf32, #tpu.memory_space<vmem>>, vector<8x32xf32>
    tpu.vector_store %arg5[%c0_12, %c0_13], %25 {strides = array<i32>} : memref<8x32xf32, #tpu.memory_space<vmem>>, vector<8x32xf32>,
    %27 = math.tanh %25 : vector<8x32xf32>
    %28 = arith.mulf %19, %27 : vector<8x32xf32>
    %c0_14 = arith.constant 0 : index
    %c0_15 = arith.constant 0 : index
    %29 = vector.load %arg4[%c0_14, %c0_15] : memref<8x32xf32, #tpu.memory_space<vmem>>, vector<8x32xf32>
    tpu.vector_store %arg4[%c0_14, %c0_15], %28 {strides = array<i32>} : memref<8x32xf32, #tpu.memory_space<vmem>>, vector<8x32xf32>,
    return
  }
  func.func @transform_0(%arg0: i32, %arg1: i32) -> (i32, i32, i32) {
    %c0_i32 = arith.constant 0 : i32
    %c0_i32_0 = arith.constant 0 : i32
    return %arg1, %arg0, %c0_i32 : i32, i32, i32
  }
  func.func @transform_1(%arg0: i32, %arg1: i32) -> (i32, i32) {
    %c0_i32 = arith.constant 0 : i32
    %c0_i32_0 = arith.constant 0 : i32
    %c0_i32_1 = arith.constant 0 : i32
    return %c0_i32, %c0_i32_0 : i32, i32
  }
  func.func @transform_2(%arg0: i32, %arg1: i32) -> (i32, i32) {
    %c0_i32 = arith.constant 0 : i32
    %c0_i32_0 = arith.constant 0 : i32
    return %arg0, %c0_i32 : i32, i32
  }
}

module attributes {stable_mosaic.version = 11 : i64} {
  func.func @head_kernel(%arg0: memref<8x32xbf16, #tpu.memory_space<vmem>>, %arg1: memref<8x16xbf16, #tpu.memory_space<vmem>>, %arg2: memref<8x8xbf16, #tpu.memory_space<vmem>>, %arg3: memref<8x1xf32, #tpu.memory_space<vmem>>, %arg4: memref<8x2xf32, #tpu.memory_space<vmem>>, %arg5: memref<2x8xf32, #tpu.memory_space<vmem>>, %arg6: memref<32x32xbf16, #tpu.memory_space<vmem>>, %arg7: memref<1x32xf32, #tpu.memory_space<vmem>>, %arg8: memref<32x32xbf16, #tpu.memory_space<vmem>>, %arg9: memref<1x32xf32, #tpu.memory_space<vmem>>, %arg10: memref<16x32xbf16, #tpu.memory_space<vmem>>, %arg11: memref<8x32xbf16, #tpu.memory_space<vmem>>, %arg12: memref<32x32xbf16, #tpu.memory_space<vmem>>, %arg13: memref<1x32xf32, #tpu.memory_space<vmem>>, %arg14: memref<32x1xbf16, #tpu.memory_space<vmem>>, %arg15: memref<1x1xf32, #tpu.memory_space<vmem>>, %arg16: memref<32x1xbf16, #tpu.memory_space<vmem>>, %arg17: memref<1x1xf32, #tpu.memory_space<vmem>>, %arg18: memref<2x1xf32, #tpu.memory_space<vmem>>) attributes {dimension_semantics = [], scalar_prefetch = 0 : i64, scratch_operands = 0 : i64, tpu.core_type = #tpu.core_type<tc>} {
    %c0 = arith.constant 0 : index
    %c0_0 = arith.constant 0 : index
    %0 = vector.load %arg0[%c0, %c0_0] : memref<8x32xbf16, #tpu.memory_space<vmem>>, vector<8x32xbf16>
    %c0_1 = arith.constant 0 : index
    %c0_2 = arith.constant 0 : index
    %1 = vector.load %arg1[%c0_1, %c0_2] : memref<8x16xbf16, #tpu.memory_space<vmem>>, vector<8x16xbf16>
    %c0_3 = arith.constant 0 : index
    %c0_4 = arith.constant 0 : index
    %2 = vector.load %arg2[%c0_3, %c0_4] : memref<8x8xbf16, #tpu.memory_space<vmem>>, vector<8x8xbf16>
    %c0_5 = arith.constant 0 : index
    %c0_6 = arith.constant 0 : index
    %3 = vector.load %arg3[%c0_5, %c0_6] : memref<8x1xf32, #tpu.memory_space<vmem>>, vector<8x1xf32>
    %c0_7 = arith.constant 0 : index
    %c0_8 = arith.constant 0 : index
    %4 = vector.load %arg4[%c0_7, %c0_8] : memref<8x2xf32, #tpu.memory_space<vmem>>, vector<8x2xf32>
    %c0_9 = arith.constant 0 : index
    %c0_10 = arith.constant 0 : index
    %5 = vector.load %arg5[%c0_9, %c0_10] : memref<2x8xf32, #tpu.memory_space<vmem>>, vector<2x8xf32>
    %c0_11 = arith.constant 0 : index
    %c0_12 = arith.constant 0 : index
    %6 = vector.load %arg6[%c0_11, %c0_12] : memref<32x32xbf16, #tpu.memory_space<vmem>>, vector<32x32xbf16>
    %cst = arith.constant dense<0.000000e+00> : vector<8x32xf32>
    %7 = tpu.matmul %0, %6, %cst {dimension_numbers = #tpu.dot_dimension_numbers<[1], [0], [0], [1], [0, 0, 1, 1], [], []>} : vector<8x32xbf16>, vector<32x32xbf16>, vector<8x32xf32> -> vector<8x32xf32>
    %c0_13 = arith.constant 0 : index
    %c0_14 = arith.constant 0 : index
    %8 = vector.load %arg7[%c0_13, %c0_14] : memref<1x32xf32, #tpu.memory_space<vmem>>, vector<1x32xf32>
    %9 = vector.broadcast %8 : vector<1x32xf32> to vector<8x32xf32>
    %10 = arith.addf %7, %9 : vector<8x32xf32>
    %cst_15 = arith.constant 0.000000e+00 : f32
    %11 = vector.broadcast %cst_15 : f32 to vector<8x32xf32>
    %12 = arith.maximumf %10, %11 : vector<8x32xf32>
    %13 = arith.truncf %12 : vector<8x32xf32> to vector<8x32xbf16>
    %c0_16 = arith.constant 0 : index
    %c0_17 = arith.constant 0 : index
    %14 = vector.load %arg8[%c0_16, %c0_17] : memref<32x32xbf16, #tpu.memory_space<vmem>>, vector<32x32xbf16>
    %cst_18 = arith.constant dense<0.000000e+00> : vector<8x32xf32>
    %15 = tpu.matmul %13, %14, %cst_18 {dimension_numbers = #tpu.dot_dimension_numbers<[1], [0], [0], [1], [0, 0, 1, 1], [], []>} : vector<8x32xbf16>, vector<32x32xbf16>, vector<8x32xf32> -> vector<8x32xf32>
    %c0_19 = arith.constant 0 : index
    %c0_20 = arith.constant 0 : index
    %16 = vector.load %arg9[%c0_19, %c0_20] : memref<1x32xf32, #tpu.memory_space<vmem>>, vector<1x32xf32>
    %17 = vector.broadcast %16 : vector<1x32xf32> to vector<8x32xf32>
    %18 = arith.addf %15, %17 : vector<8x32xf32>
    %cst_21 = arith.constant 0.000000e+00 : f32
    %19 = vector.broadcast %cst_21 : f32 to vector<8x32xf32>
    %20 = arith.maximumf %18, %19 : vector<8x32xf32>
    %c0_22 = arith.constant 0 : index
    %c0_23 = arith.constant 0 : index
    %21 = vector.load %arg10[%c0_22, %c0_23] : memref<16x32xbf16, #tpu.memory_space<vmem>>, vector<16x32xbf16>
    %cst_24 = arith.constant dense<0.000000e+00> : vector<8x32xf32>
    %22 = tpu.matmul %1, %21, %cst_24 {dimension_numbers = #tpu.dot_dimension_numbers<[1], [0], [0], [1], [0, 0, 1, 1], [], []>} : vector<8x16xbf16>, vector<16x32xbf16>, vector<8x32xf32> -> vector<8x32xf32>
    %c0_25 = arith.constant 0 : index
    %c0_26 = arith.constant 0 : index
    %23 = vector.load %arg11[%c0_25, %c0_26] : memref<8x32xbf16, #tpu.memory_space<vmem>>, vector<8x32xbf16>
    %cst_27 = arith.constant dense<0.000000e+00> : vector<8x32xf32>
    %24 = tpu.matmul %2, %23, %cst_27 {dimension_numbers = #tpu.dot_dimension_numbers<[1], [0], [0], [1], [0, 0, 1, 1], [], []>} : vector<8x8xbf16>, vector<8x32xbf16>, vector<8x32xf32> -> vector<8x32xf32>
    %25 = arith.addf %22, %24 : vector<8x32xf32>
    %c0_28 = arith.constant 0 : index
    %c0_29 = arith.constant 0 : index
    %26 = vector.load %arg12[%c0_28, %c0_29] : memref<32x32xbf16, #tpu.memory_space<vmem>>, vector<32x32xbf16>
    %cst_30 = arith.constant dense<0.000000e+00> : vector<8x32xf32>
    %27 = tpu.matmul %13, %26, %cst_30 {dimension_numbers = #tpu.dot_dimension_numbers<[1], [0], [0], [1], [0, 0, 1, 1], [], []>} : vector<8x32xbf16>, vector<32x32xbf16>, vector<8x32xf32> -> vector<8x32xf32>
    %28 = arith.addf %25, %27 : vector<8x32xf32>
    %c0_31 = arith.constant 0 : index
    %c0_32 = arith.constant 0 : index
    %29 = vector.load %arg13[%c0_31, %c0_32] : memref<1x32xf32, #tpu.memory_space<vmem>>, vector<1x32xf32>
    %30 = vector.broadcast %29 : vector<1x32xf32> to vector<8x32xf32>
    %31 = arith.addf %28, %30 : vector<8x32xf32>
    %cst_33 = arith.constant 0.000000e+00 : f32
    %32 = vector.broadcast %cst_33 : f32 to vector<8x32xf32>
    %33 = arith.maximumf %31, %32 : vector<8x32xf32>
    %34 = arith.truncf %33 : vector<8x32xf32> to vector<8x32xbf16>
    %c0_34 = arith.constant 0 : index
    %c0_35 = arith.constant 0 : index
    %35 = vector.load %arg14[%c0_34, %c0_35] : memref<32x1xbf16, #tpu.memory_space<vmem>>, vector<32x1xbf16>
    %cst_36 = arith.constant dense<0.000000e+00> : vector<8x1xf32>
    %36 = tpu.matmul %34, %35, %cst_36 {dimension_numbers = #tpu.dot_dimension_numbers<[1], [0], [0], [1], [0, 0, 1, 1], [], []>} : vector<8x32xbf16>, vector<32x1xbf16>, vector<8x1xf32> -> vector<8x1xf32>
    %c0_37 = arith.constant 0 : index
    %c0_38 = arith.constant 0 : index
    %37 = vector.load %arg15[%c0_37, %c0_38] : memref<1x1xf32, #tpu.memory_space<vmem>>, vector<1x1xf32>
    %38 = vector.broadcast %37 : vector<1x1xf32> to vector<8x1xf32>
    %39 = arith.addf %36, %38 : vector<8x1xf32>
    %cst_39 = arith.constant 1.000000e+00 : f32
    %40 = vector.broadcast %cst_39 : f32 to vector<8x1xf32>
    %41 = arith.subf %40, %3 : vector<8x1xf32>
    %cst_40 = arith.constant -1.000000e+05 : f32
    %42 = vector.broadcast %cst_40 : f32 to vector<8x1xf32>
    %43 = arith.mulf %42, %41 : vector<8x1xf32>
    %44 = arith.addf %39, %43 : vector<8x1xf32>
    %cst_41 = arith.constant dense<0xFF800000> : vector<1xf32>
    %45 = vector.multi_reduction <maximumf>, %44, %cst_41 [0] : vector<8x1xf32> to vector<1xf32>
    %46 = vector.shape_cast %45 : vector<1xf32> to vector<1x1xf32>
    %47 = vector.broadcast %46 : vector<1x1xf32> to vector<8x1xf32>
    %48 = arith.subf %44, %47 : vector<8x1xf32>
    %49 = math.exp %48 : vector<8x1xf32>
    %cst_42 = arith.constant dense<0.000000e+00> : vector<2x1xf32>
    %50 = tpu.matmul %5, %49, %cst_42 {dimension_numbers = #tpu.dot_dimension_numbers<[1], [0], [0], [1], [0, 0, 1, 1], [], []>} : vector<2x8xf32>, vector<8x1xf32>, vector<2x1xf32> -> vector<2x1xf32>
    %cst_43 = arith.constant dense<0.000000e+00> : vector<8x1xf32>
    %51 = tpu.matmul %4, %50, %cst_43 {dimension_numbers = #tpu.dot_dimension_numbers<[1], [0], [0], [1], [0, 0, 1, 1], [], []>} : vector<8x2xf32>, vector<2x1xf32>, vector<8x1xf32> -> vector<8x1xf32>
    %52 = tpu.reciprocal %51 {approx = true} : vector<8x1xf32> -> vector<8x1xf32>
    %53 = arith.mulf %49, %52 : vector<8x1xf32>
    %54 = vector.broadcast %53 : vector<8x1xf32> to vector<8x32xf32>
    %55 = arith.mulf %20, %54 : vector<8x32xf32>
    %cst_44 = arith.constant dense<0.000000e+00> : vector<2x32xf32>
    %56 = tpu.matmul %5, %55, %cst_44 {dimension_numbers = #tpu.dot_dimension_numbers<[1], [0], [0], [1], [0, 0, 1, 1], [], []>} : vector<2x8xf32>, vector<8x32xf32>, vector<2x32xf32> -> vector<2x32xf32>
    %57 = arith.truncf %56 : vector<2x32xf32> to vector<2x32xbf16>
    %c0_45 = arith.constant 0 : index
    %c0_46 = arith.constant 0 : index
    %58 = vector.load %arg16[%c0_45, %c0_46] : memref<32x1xbf16, #tpu.memory_space<vmem>>, vector<32x1xbf16>
    %cst_47 = arith.constant dense<0.000000e+00> : vector<2x1xf32>
    %59 = tpu.matmul %57, %58, %cst_47 {dimension_numbers = #tpu.dot_dimension_numbers<[1], [0], [0], [1], [0, 0, 1, 1], [], []>} : vector<2x32xbf16>, vector<32x1xbf16>, vector<2x1xf32> -> vector<2x1xf32>
    %c0_48 = arith.constant 0 : index
    %c0_49 = arith.constant 0 : index
    %60 = vector.load %arg17[%c0_48, %c0_49] : memref<1x1xf32, #tpu.memory_space<vmem>>, vector<1x1xf32>
    %61 = vector.broadcast %60 : vector<1x1xf32> to vector<2x1xf32>
    %62 = arith.addf %59, %61 : vector<2x1xf32>
    %cst_50 = arith.constant 5.000000e-01 : f32
    %63 = vector.broadcast %cst_50 : f32 to vector<2x1xf32>
    %64 = arith.mulf %63, %62 : vector<2x1xf32>
    %65 = math.tanh %64 : vector<2x1xf32>
    %cst_51 = arith.constant 1.000000e+00 : f32
    %66 = vector.broadcast %cst_51 : f32 to vector<2x1xf32>
    %67 = arith.addf %65, %66 : vector<2x1xf32>
    %cst_52 = arith.constant 5.000000e-01 : f32
    %68 = vector.broadcast %cst_52 : f32 to vector<2x1xf32>
    %69 = arith.mulf %68, %67 : vector<2x1xf32>
    %c0_53 = arith.constant 0 : index
    %c0_54 = arith.constant 0 : index
    %70 = vector.load %arg18[%c0_53, %c0_54] : memref<2x1xf32, #tpu.memory_space<vmem>>, vector<2x1xf32>
    tpu.vector_store %arg18[%c0_53, %c0_54], %69 {strides = array<i32>} : memref<2x1xf32, #tpu.memory_space<vmem>>, vector<2x1xf32>,
    return
  }
}

</mosaic_0001>

<llo_original>
// kernel: lstm_model_forward.3
$region0: #{lstm_model_forward.3}
  #allocation0 [shape = 'u32[]', space=smem, size = 0x4, offset = 0x4, fixed_abs, tag = 'smem constant byte address 0x4 - core index']
  #allocation1 [shape = 'u32[144,128]{1,0:T(1,128)}', space=vmem, size = 0x12000, scoped, tag = 'internal scratch']
  %s0 = inlined_call_operand.vmem [shape: bf16[8,8,32], index: 0, kind: input, shape index: {}]
  %s1 = inlined_call_operand.vmem [shape: bf16[32,128], index: 1, kind: input, shape index: {}]
  %s2 = inlined_call_operand.vmem [shape: f32[1,128], index: 2, kind: input, shape index: {}]
  %s3 = inlined_call_operand.vmem [shape: f32[8,8,128], index: 3, kind: output, shape index: {}]
  %s4 = sld [smem:[#allocation0]]
  $region45: #{lstm_model_forward.3} parent=0
    _
  %s6 = ssub.s32 1, %s4
  %s7 = scalar_select 0, %s6, %s4
  loop: start=0, step=1, limit=10
  $region2: #{lstm_model_forward.3} parent=0 // loop_pre_header
    _
  $region3: #{lstm_model_forward.3} parent=0 // loop_header
    %s9 = sphi 0, %s13
    %p10 = scmp.ge.s32.totalorder %s9, 10
    %s16 = sphi 0, %s28
    %s17 = sphi 0, %s24
    %s18 = sphi 0, %s16
    %s19 = sphi 0, %s17
    %s20 = sphi 0, %s18
    %s21 = sphi 0, %s19
    %s33 = sphi 0, %s35
    %s36 = sphi 0, %s33
    %s37 = sphi 0, %s36
    %s53 = sphi 0, %s37
    %s57 = sphi 0, %s57
    %s59 = sphi 0, %s57
    %s60 = sphi 0, %s59
    %s74 = sphi 0, %s60
    %s78 = sphi 0, %s78
    %s80 = sphi 0, %s78
    %s81 = sphi 0, %s80
    %s95 = sphi 0, %s81
    %s103 = sphi 0, %s105
    %s106 = sphi 0, %s103
    %s107 = sphi 0, %s106
    %s123 = sphi 0, %s107
  $region4: #{lstm_model_forward.3} parent=0 // loop_header_branch
    %12 = sbr.rel (%p10) target = $region8
  $region5: #{lstm_model_forward.3} parent=0 // loop_body
    %s14 = ssub.s32 %s9, 1
    %s15 = ssub.s32 %s9, 2
    %s22 = sadd.s32 1, %s17
    %p23 = scmp.ge.s32.totalorder %s22, 8
    %s24 = scalar_select %p23, 0, %s22
    %s25 = sadd.s32 1, %s16
    %s26 = scalar_select %p23, %s25, %s16
    %p27 = scmp.ge.s32.totalorder %s26, 1
    %s28 = scalar_select %p27, 0, %s26
    %s29 = ssub.s32 %s17, %s24
    %s30 = ssub.s32 %s16, %s28
    %s31 = sor.u32 %s29, %s30
    %p32 = scmp.eq.s32.totalorder %s31, 0
    %s34 = sadd.s32 %s33, 1
    %s35 = scalar_select %p32, %s33, %s34
    %p38 = pneg %p32
    %p39 = scmp.eq.s32.totalorder %s9, 7
    %p40 = por %p38, %p39
    %p41 = scmp.ne.s32.totalorder %s33, %s36
    %p42 = scmp.eq.s32.totalorder %s9, 0
    %p43 = por %p41, %p42
    %p44 = scmp.ne.s32.totalorder %s33, %s36
    %p45 = scmp.eq.s32.totalorder %s14, 7
    %p46 = por %p44, %p45
    %p47 = scmp.ne.s32.totalorder %s36, %s37
    %p48 = scmp.eq.s32.totalorder %s14, 0
    %p49 = por %p47, %p48
    %p50 = scmp.ne.s32.totalorder %s36, %s37
    %p51 = scmp.eq.s32.totalorder %s15, 7
    %p52 = por %p50, %p51
    %p54 = scmp.ne.s32.totalorder %s37, %s53
    %p55 = scmp.eq.s32.totalorder %s15, 0
    %p56 = por %p54, %p55
    %s58 = sadd.s32 %s57, 1
    %p61 = scmp.eq.s32.totalorder %s9, 7
    %p62 = scmp.ne.s32.totalorder %s57, %s59
    %p63 = scmp.eq.s32.totalorder %s9, 0
    %p64 = por %p62, %p63
    %p65 = scmp.ne.s32.totalorder %s57, %s59
    %p66 = scmp.eq.s32.totalorder %s14, 7
    %p67 = por %p65, %p66
    %p68 = scmp.ne.s32.totalorder %s59, %s60
    %p69 = scmp.eq.s32.totalorder %s14, 0
    %p70 = por %p68, %p69
    %p71 = scmp.ne.s32.totalorder %s59, %s60
    %p72 = scmp.eq.s32.totalorder %s15, 7
    %p73 = por %p71, %p72
    %p75 = scmp.ne.s32.totalorder %s60, %s74
    %p76 = scmp.eq.s32.totalorder %s15, 0
    %p77 = por %p75, %p76
    %s79 = sadd.s32 %s78, 1
    %p82 = scmp.eq.s32.totalorder %s9, 7
    %p83 = scmp.ne.s32.totalorder %s78, %s80
    %p84 = scmp.eq.s32.totalorder %s9, 0
    %p85 = por %p83, %p84
    %p86 = scmp.ne.s32.totalorder %s78, %s80
    %p87 = scmp.eq.s32.totalorder %s14, 7
    %p88 = por %p86, %p87
    %p89 = scmp.ne.s32.totalorder %s80, %s81
    %p90 = scmp.eq.s32.totalorder %s14, 0
    %p91 = por %p89, %p90
    %p92 = scmp.ne.s32.totalorder %s80, %s81
    %p93 = scmp.eq.s32.totalorder %s15, 7
    %p94 = por %p92, %p93
    %p96 = scmp.ne.s32.totalorder %s81, %s95
    %p97 = scmp.eq.s32.totalorder %s15, 0
    %p98 = por %p96, %p97
    %s99 = ssub.s32 %s17, %s24
    %s100 = ssub.s32 %s16, %s28
    %s101 = sor.u32 %s99, %s100
    %p102 = scmp.eq.s32.totalorder %s101, 0
    %s104 = sadd.s32 %s103, 1
    %s105 = scalar_select %p102, %s103, %s104
    %p108 = pneg %p102
    %p109 = scmp.eq.s32.totalorder %s9, 7
    %p110 = por %p108, %p109
    %p111 = scmp.ne.s32.totalorder %s103, %s106
    %p112 = scmp.eq.s32.totalorder %s9, 0
    %p113 = por %p111, %p112
    %p114 = scmp.ne.s32.totalorder %s103, %s106
    %p115 = scmp.eq.s32.totalorder %s14, 7
    %p116 = por %p114, %p115
    %p117 = scmp.ne.s32.totalorder %s106, %s107
    %p118 = scmp.eq.s32.totalorder %s14, 0
    %p119 = por %p117, %p118
    %p120 = scmp.ne.s32.totalorder %s106, %s107
    %p121 = scmp.eq.s32.totalorder %s15, 7
    %p122 = por %p120, %p121
    %p124 = scmp.ne.s32.totalorder %s107, %s123
    %p125 = scmp.eq.s32.totalorder %s15, 0
    %p126 = por %p124, %p125
    %p127 = scmp.le.s32.totalorder 1, %s9
    %p128 = scmp.lt.s32.totalorder %s9, 9
    %p129 = pnand %p127, %p128
    %p130 = pneg %p129
    // Predicated region
    $region9: #{lstm_model_forward.3} parent=5 // pred_check
      _
    $region10: #{lstm_model_forward.3} parent=5 // pred_check_branch
      %132 = sbr.rel (%p129) target = $region12
    $region11: #{lstm_model_forward.3} parent=5 // pred_region
      %s133 = ssub.s32 %s9, 1
      // Predicated region
      $region13: #{lstm_model_forward.3} parent=11 // pred_check
        %p134 = pneg %p70
      $region14: #{lstm_model_forward.3} parent=11 // pred_check_branch
        %136 = sbr.rel (%p134) target = $region16
      $region15: #{lstm_model_forward.3} parent=11 // pred_region
        _
      $region16: #{lstm_model_forward.3} parent=11 // pred_fallthru
        _
      // Predicated region
      $region17: #{lstm_model_forward.3} parent=11 // pred_check
        %p137 = pneg %p91
      $region18: #{lstm_model_forward.3} parent=11 // pred_check_branch
        %139 = sbr.rel (%p137) target = $region20
      $region19: #{lstm_model_forward.3} parent=11 // pred_region
        _
      $region20: #{lstm_model_forward.3} parent=11 // pred_fallthru
        _
    $region12: #{lstm_model_forward.3} parent=5 // pred_fallthru
      _
    %p140 = scmp.lt.s32.totalorder %s9, 8
    // Predicated region
    $region21: #{lstm_model_forward.3} parent=5 // pred_check
      %p141 = pneg %p140
    $region22: #{lstm_model_forward.3} parent=5 // pred_check_branch
      %143 = sbr.rel (%p141) target = $region24
    $region23: #{lstm_model_forward.3} parent=5 // pred_region
      // Predicated region
      $region25: #{lstm_model_forward.3} parent=23 // pred_check
        %p144 = pneg %p43
      $region26: #{lstm_model_forward.3} parent=23 // pred_check_branch
        %146 = sbr.rel (%p144) target = $region28
      $region27: #{lstm_model_forward.3} parent=23 // pred_region
        %p147 = scmp.lt.s32.totalorder %s17, 7
        %s148 = scalar_select %p147, %s17, 7
        %p149 = scmp.lt.s32.totalorder %s16, 0
        %s150 = scalar_select %p149, %s16, 0
        %s151 = sadd.s32 %s150, %s148
        %s152 = smul.addr %s151, 4
        %s153 = scalar_lea.vmem %s0, %s152
      $region28: #{lstm_model_forward.3} parent=23 // pred_fallthru
        _
    $region24: #{lstm_model_forward.3} parent=5 // pred_fallthru
      _
    %p154 = scmp.le.s32.totalorder 1, %s9
    %p155 = scmp.lt.s32.totalorder %s9, 9
    %p156 = pnand %p154, %p155
    %p157 = pneg %p156
    // Predicated region
    $region29: #{lstm_model_forward.3} parent=5 // pred_check
      _
    $region30: #{lstm_model_forward.3} parent=5 // pred_check_branch
      %159 = sbr.rel (%p156) target = $region32
    $region31: #{lstm_model_forward.3} parent=5 // pred_region
      %s160 = ssub.s32 %s9, 1
      %p161 = scmp.lt.s32.totalorder %s19, 7
      %s162 = scalar_select %p161, %s19, 7
      %p163 = scmp.lt.s32.totalorder %s18, 0
      %s164 = scalar_select %p163, %s18, 0
      %s165 = sadd.s32 %s164, %s162
      %s166 = smul.addr %s165, 4
      %s167 = scalar_lea.vmem %s0, %s166
      %p168 = pneg %p49
      %p169 = pneg %p46
      %p170 = pneg %p70
      %p171 = pneg %p67
      %p172 = pneg %p91
      %p173 = pneg %p88
      %p174 = pneg %p119
      %p175 = pneg %p116
      %p176 = scmp.lt.s32.totalorder %s19, 7
      %s177 = scalar_select %p176, %s19, 7
      %p178 = scmp.lt.s32.totalorder %s18, 0
      %s179 = scalar_select %p178, %s18, 0
      %s180 = sadd.s32 %s179, %s177
      %s181 = smul.addr %s180, 8
      %s182 = scalar_lea.vmem %s3, %s181
      %p183 = scmp.lt.s32.totalorder %s19, 7
      %s184 = scalar_select %p183, %s19, 7
      %p185 = scmp.lt.s32.totalorder %s18, 0
      %s186 = scalar_select %p185, %s18, 0
      %s187 = sadd.s32 %s186, %s184
      %s188 = smul.addr %s187, 4
      %s189 = scalar_lea.vmem %s0, %s188
      %p190 = scmp.lt.s32.totalorder %s19, 7
      %s191 = scalar_select %p190, %s19, 7
      %p192 = scmp.lt.s32.totalorder %s18, 0
      %s193 = scalar_select %p192, %s18, 0
      %s194 = sadd.s32 %s193, %s191
      %s195 = smul.addr %s194, 8
      %s196 = scalar_lea.vmem %s3, %s195
      %v198 = vld [vmem:[%s189] sm:$0xf]
      %v199 = vld [vmem:[%s1] sm:$0xf]
      %v200 = vld [vmem:[%s1 + $0x4] sm:$0xf]
      %v201 = vld [vmem:[%s1 + $0x8] sm:$0xf]
      %v202 = vld [vmem:[%s1 + $0xc] sm:$0xf]
      %v203 = vld [vmem:[%s2] sm:$0x1]
      %v205 = vlaneseq
      %v206 = vshrl.u32 %v205, 7
      %v207 = vsub.s32 0, %v206
      %v208 = vrot.slane %v203, %v207
      %v214 = vunpack.c.l.b16 %v199
      %v215 = vunpack.c.l.b16 %v200
      %v216 = vunpack.c.l.b16 %v201
      %v217 = vunpack.c.l.b16 %v202
      %v218 = vpack.c.b16 %v215, %v214
      %v219 = vpack.c.b16 %v217, %v216
      %vm222 = vcmask 261120
      %v224 = vsel %vm222, %v198, 0
      %226 = vmatprep.subr.bf16.mxu0 0
      %227 = vmatpush1.bf16.msra.mxu0 %v218
      %228 = vmatprep.subr.bf16.mxu0 0
      %229 = vmatpush1.bf16.msra.mxu0 %v219
      %230 = vmatprep.subr.bf16.mxu0 0
      %231 = vmatpush1.bf16.msra.mxu0 0
      %232 = vmatprep.subr.bf16.mxu0 0
      %233 = vmatpush1.bf16.msra.mxu0 0
      %234 = vmatprep.subr.bf16.mxu0 0
      %235 = vmatpush1.bf16.msra.mxu0 0
      %236 = vmatprep.subr.bf16.mxu0 0
      %237 = vmatpush1.bf16.msra.mxu0 0
      %238 = vmatprep.subr.bf16.mxu0 0
      %239 = vmatpush1.bf16.msra.mxu0 0
      %240 = vmatprep.subr.bf16.mxu0 0
      %241 = vmatpush1.bf16.msra.mxu0 0
      %242 = vmatprep.subr.bf16.mxu0 0
      %243 = vmatpush1.bf16.msra.mxu0 0
      %244 = vmatprep.subr.bf16.mxu0 0
      %245 = vmatpush1.bf16.msra.mxu0 0
      %246 = vmatprep.subr.bf16.mxu0 0
      %247 = vmatpush1.bf16.msra.mxu0 0
      %248 = vmatprep.subr.bf16.mxu0 0
      %249 = vmatpush1.bf16.msra.mxu0 0
      %250 = vmatprep.subr.bf16.mxu0 0
      %251 = vmatpush1.bf16.msra.mxu0 0
      %252 = vmatprep.subr.bf16.mxu0 0
      %253 = vmatpush1.bf16.msra.mxu0 0
      %254 = vmatprep.subr.bf16.mxu0 0
      %255 = vmatpush1.bf16.msra.mxu0 0
      %256 = vmatprep.subr.bf16.mxu0 0
      %257 = vmatpush1.bf16.msra.mxu0 0
      %258 = vmatprep.mubr.bf16.mxu0 0
      %259 = vmatmul.mubr.bf16.gmra.mrb[0].mxu0 %v224
      %v260 = vpop.f32.mrb[0].mxu0
      %v261 = vadd.f32 %v208, %v260
      %v262 = vpop.f32.mrb[0].mxu0
      %v263 = vpop.f32.mrb[0].mxu0
      %v264 = vpop.f32.mrb[0].mxu0
      %265 = vdwg.mxu0
      %266 = vst [vmem:[%s196] sm:$0xff] %v261
      %p267 = scmp.lt.s32.totalorder %s19, 7
      %s268 = scalar_select %p267, %s19, 7
      %p269 = scmp.lt.s32.totalorder %s18, 0
      %s270 = scalar_select %p269, %s18, 0
      %s271 = sadd.s32 %s270, %s268
      %s272 = smul.addr %s271, 8
      %s273 = scalar_lea.vmem %s3, %s272
      // Predicated region
      $region33: #{lstm_model_forward.3} parent=31 // pred_check
        %p274 = pneg %p116
      $region34: #{lstm_model_forward.3} parent=31 // pred_check_branch
        %276 = sbr.rel (%p274) target = $region36
      $region35: #{lstm_model_forward.3} parent=31 // pred_region
        _
      $region36: #{lstm_model_forward.3} parent=31 // pred_fallthru
        _
    $region32: #{lstm_model_forward.3} parent=5 // pred_fallthru
      _
    %p277 = scmp.le.s32.totalorder 2, %s9
    // Predicated region
    $region37: #{lstm_model_forward.3} parent=5 // pred_check
      %p278 = pneg %p277
    $region38: #{lstm_model_forward.3} parent=5 // pred_check_branch
      %280 = sbr.rel (%p278) target = $region40
    $region39: #{lstm_model_forward.3} parent=5 // pred_region
      %s281 = ssub.s32 %s9, 2
      // Predicated region
      $region41: #{lstm_model_forward.3} parent=39 // pred_check
        %p282 = pneg %p122
      $region42: #{lstm_model_forward.3} parent=39 // pred_check_branch
        %284 = sbr.rel (%p282) target = $region44
      $region43: #{lstm_model_forward.3} parent=39 // pred_region
        %p285 = scmp.lt.s32.totalorder %s21, 7
        %s286 = scalar_select %p285, %s21, 7
        %p287 = scmp.lt.s32.totalorder %s20, 0
        %s288 = scalar_select %p287, %s20, 0
        %s289 = sadd.s32 %s288, %s286
        %s290 = smul.addr %s289, 8
        %s291 = scalar_lea.vmem %s3, %s290
      $region44: #{lstm_model_forward.3} parent=39 // pred_fallthru
        _
    $region40: #{lstm_model_forward.3} parent=5 // pred_fallthru
      _
  $region6: #{lstm_model_forward.3} parent=0 // loop_footer
    %s13 = sadd.s32 1, %s9
  $region7: #{lstm_model_forward.3} parent=0 // loop_footer_branch
    %8 = sbr.rel target = $region3
  $region8: #{lstm_model_forward.3} parent=0 // loop_exit
    _

// kernel: lstm_model_forward.4
$region0: #{lstm_model_forward.4}
  #allocation0 [shape = 'u32[]', space=smem, size = 0x4, offset = 0x4, fixed_abs, tag = 'smem constant byte address 0x4 - core index']
  #allocation1 [shape = 'u32[144,128]{1,0:T(1,128)}', space=vmem, size = 0x12000, scoped, tag = 'internal scratch']
  #allocation2 [shape = 'f32[8,32]{1,0:T(8,128)}', space=vmem, size = 0x1000, scoped, tag = 'scratch operand']
  %s0 = inlined_call_operand.vmem [shape: f32[8,8,128], index: 0, kind: input, shape index: {}]
  %s1 = inlined_call_operand.vmem [shape: bf16[32,128], index: 1, kind: input, shape index: {}]
  %s2 = inlined_call_operand.vmem [shape: f32[8,32], index: 2, kind: output, shape index: {}]
  %s3 = sld [smem:[#allocation0]]
  $region45: #{lstm_model_forward.4} parent=0
    _
  %s5 = ssub.s32 1, %s3
  %s6 = scalar_select 0, %s5, %s3
  loop: start=0, step=1, limit=10
  $region2: #{lstm_model_forward.4} parent=0 // loop_pre_header
    _
  $region3: #{lstm_model_forward.4} parent=0 // loop_header
    %s8 = sphi 0, %s12
    %p9 = scmp.ge.s32.totalorder %s8, 10
    %s15 = sphi 0, %s27
    %s16 = sphi 0, %s23
    %s17 = sphi 0, %s15
    %s18 = sphi 0, %s16
    %s19 = sphi 0, %s17
    %s20 = sphi 0, %s18
    %s32 = sphi 0, %s34
    %s35 = sphi 0, %s32
    %s36 = sphi 0, %s35
    %s52 = sphi 0, %s36
    %s56 = sphi 0, %s56
    %s58 = sphi 0, %s56
    %s59 = sphi 0, %s58
    %s73 = sphi 0, %s59
    %s79 = sphi 0, %s81
    %s82 = sphi 0, %s79
    %s83 = sphi 0, %s82
    %s99 = sphi 0, %s83
  $region4: #{lstm_model_forward.4} parent=0 // loop_header_branch
    %11 = sbr.rel (%p9) target = $region8
  $region5: #{lstm_model_forward.4} parent=0 // loop_body
    %s13 = ssub.s32 %s8, 1
    %s14 = ssub.s32 %s8, 2
    %s21 = sadd.s32 1, %s16
    %p22 = scmp.ge.s32.totalorder %s21, 8
    %s23 = scalar_select %p22, 0, %s21
    %s24 = sadd.s32 1, %s15
    %s25 = scalar_select %p22, %s24, %s15
    %p26 = scmp.ge.s32.totalorder %s25, 1
    %s27 = scalar_select %p26, 0, %s25
    %s28 = ssub.s32 %s16, %s23
    %s29 = ssub.s32 %s15, %s27
    %s30 = sor.u32 %s28, %s29
    %p31 = scmp.eq.s32.totalorder %s30, 0
    %s33 = sadd.s32 %s32, 1
    %s34 = scalar_select %p31, %s32, %s33
    %p37 = pneg %p31
    %p38 = scmp.eq.s32.totalorder %s8, 7
    %p39 = por %p37, %p38
    %p40 = scmp.ne.s32.totalorder %s32, %s35
    %p41 = scmp.eq.s32.totalorder %s8, 0
    %p42 = por %p40, %p41
    %p43 = scmp.ne.s32.totalorder %s32, %s35
    %p44 = scmp.eq.s32.totalorder %s13, 7
    %p45 = por %p43, %p44
    %p46 = scmp.ne.s32.totalorder %s35, %s36
    %p47 = scmp.eq.s32.totalorder %s13, 0
    %p48 = por %p46, %p47
    %p49 = scmp.ne.s32.totalorder %s35, %s36
    %p50 = scmp.eq.s32.totalorder %s14, 7
    %p51 = por %p49, %p50
    %p53 = scmp.ne.s32.totalorder %s36, %s52
    %p54 = scmp.eq.s32.totalorder %s14, 0
    %p55 = por %p53, %p54
    %s57 = sadd.s32 %s56, 1
    %p60 = scmp.eq.s32.totalorder %s8, 7
    %p61 = scmp.ne.s32.totalorder %s56, %s58
    %p62 = scmp.eq.s32.totalorder %s8, 0
    %p63 = por %p61, %p62
    %p64 = scmp.ne.s32.totalorder %s56, %s58
    %p65 = scmp.eq.s32.totalorder %s13, 7
    %p66 = por %p64, %p65
    %p67 = scmp.ne.s32.totalorder %s58, %s59
    %p68 = scmp.eq.s32.totalorder %s13, 0
    %p69 = por %p67, %p68
    %p70 = scmp.ne.s32.totalorder %s58, %s59
    %p71 = scmp.eq.s32.totalorder %s14, 7
    %p72 = por %p70, %p71
    %p74 = scmp.ne.s32.totalorder %s59, %s73
    %p75 = scmp.eq.s32.totalorder %s14, 0
    %p76 = por %p74, %p75
    %s77 = ssub.s32 %s15, %s27
    %p78 = scmp.eq.s32.totalorder %s77, 0
    %s80 = sadd.s32 %s79, 1
    %s81 = scalar_select %p78, %s79, %s80
    %p84 = pneg %p78
    %p85 = scmp.eq.s32.totalorder %s8, 7
    %p86 = por %p84, %p85
    %p87 = scmp.ne.s32.totalorder %s79, %s82
    %p88 = scmp.eq.s32.totalorder %s8, 0
    %p89 = por %p87, %p88
    %p90 = scmp.ne.s32.totalorder %s79, %s82
    %p91 = scmp.eq.s32.totalorder %s13, 7
    %p92 = por %p90, %p91
    %p93 = scmp.ne.s32.totalorder %s82, %s83
    %p94 = scmp.eq.s32.totalorder %s13, 0
    %p95 = por %p93, %p94
    %p96 = scmp.ne.s32.totalorder %s82, %s83
    %p97 = scmp.eq.s32.totalorder %s14, 7
    %p98 = por %p96, %p97
    %p100 = scmp.ne.s32.totalorder %s83, %s99
    %p101 = scmp.eq.s32.totalorder %s14, 0
    %p102 = por %p100, %p101
    %p103 = scmp.le.s32.totalorder 1, %s8
    %p104 = scmp.lt.s32.totalorder %s8, 9
    %p105 = pnand %p103, %p104
    %p106 = pneg %p105
    // Predicated region
    $region9: #{lstm_model_forward.4} parent=5 // pred_check
      _
    $region10: #{lstm_model_forward.4} parent=5 // pred_check_branch
      %108 = sbr.rel (%p105) target = $region12
    $region11: #{lstm_model_forward.4} parent=5 // pred_region
      %s109 = ssub.s32 %s8, 1
      // Predicated region
      $region13: #{lstm_model_forward.4} parent=11 // pred_check
        %p110 = pneg %p69
      $region14: #{lstm_model_forward.4} parent=11 // pred_check_branch
        %112 = sbr.rel (%p110) target = $region16
      $region15: #{lstm_model_forward.4} parent=11 // pred_region
        _
      $region16: #{lstm_model_forward.4} parent=11 // pred_fallthru
        _
    $region12: #{lstm_model_forward.4} parent=5 // pred_fallthru
      _
    %p113 = scmp.lt.s32.totalorder %s8, 8
    // Predicated region
    $region17: #{lstm_model_forward.4} parent=5 // pred_check
      %p114 = pneg %p113
    $region18: #{lstm_model_forward.4} parent=5 // pred_check_branch
      %116 = sbr.rel (%p114) target = $region20
    $region19: #{lstm_model_forward.4} parent=5 // pred_region
      // Predicated region
      $region21: #{lstm_model_forward.4} parent=19 // pred_check
        %p117 = pneg %p42
      $region22: #{lstm_model_forward.4} parent=19 // pred_check_branch
        %119 = sbr.rel (%p117) target = $region24
      $region23: #{lstm_model_forward.4} parent=19 // pred_region
        %p120 = scmp.lt.s32.totalorder %s16, 7
        %s121 = scalar_select %p120, %s16, 7
        %p122 = scmp.lt.s32.totalorder %s15, 0
        %s123 = scalar_select %p122, %s15, 0
        %s124 = sadd.s32 %s123, %s121
        %s125 = smul.addr %s124, 8
        %s126 = scalar_lea.vmem %s0, %s125
      $region24: #{lstm_model_forward.4} parent=19 // pred_fallthru
        _
    $region20: #{lstm_model_forward.4} parent=5 // pred_fallthru
      _
    %p127 = scmp.le.s32.totalorder 1, %s8
    %p128 = scmp.lt.s32.totalorder %s8, 9
    %p129 = pnand %p127, %p128
    %p130 = pneg %p129
    // Predicated region
    $region25: #{lstm_model_forward.4} parent=5 // pred_check
      _
    $region26: #{lstm_model_forward.4} parent=5 // pred_check_branch
      %132 = sbr.rel (%p129) target = $region28
    $region27: #{lstm_model_forward.4} parent=5 // pred_region
      %s133 = ssub.s32 %s8, 1
      %p134 = scmp.lt.s32.totalorder %s18, 7
      %s135 = scalar_select %p134, %s18, 7
      %p136 = scmp.lt.s32.totalorder %s17, 0
      %s137 = scalar_select %p136, %s17, 0
      %s138 = sadd.s32 %s137, %s135
      %s139 = smul.addr %s138, 8
      %s140 = scalar_lea.vmem %s0, %s139
      %p141 = pneg %p48
      %p142 = pneg %p45
      %p143 = pneg %p69
      %p144 = pneg %p66
      %p145 = pneg %p95
      %p146 = pneg %p92
      %p147 = scmp.lt.s32.totalorder %s17, 0
      %s148 = scalar_select %p147, %s17, 0
      %s149 = smul.addr %s148, 8
      %s150 = scalar_lea.vmem %s2, %s149
      %p151 = scmp.lt.s32.totalorder %s18, 7
      %s152 = scalar_select %p151, %s18, 7
      %p153 = scmp.lt.s32.totalorder %s17, 0
      %s154 = scalar_select %p153, %s17, 0
      %s155 = sadd.s32 %s154, %s152
      %s156 = smul.addr %s155, 8
      %s157 = scalar_lea.vmem %s0, %s156
      %p158 = scmp.lt.s32.totalorder %s17, 0
      %s159 = scalar_select %p158, %s17, 0
      %s160 = smul.addr %s159, 8
      %s161 = scalar_lea.vmem %s2, %s160
      %p163 = scmp.eq.s32.totalorder %s18, 0
      // Predicated region
      $region29: #{lstm_model_forward.4} parent=27 // pred_check
        %p164 = pneg %p163
      $region30: #{lstm_model_forward.4} parent=27 // pred_check_branch
        %166 = sbr.rel (%p164) target = $region32
      $region31: #{lstm_model_forward.4} parent=27 // pred_region
        %vm167 = vcmask 261120
        %168 = vst.msk [vmem:[%s161] sm:$0xff] %vm167, 0.0
        %169 = vst.msk [vmem:[#allocation2] sm:$0xff] %vm167, 0.0
      $region32: #{lstm_model_forward.4} parent=27 // pred_fallthru
        _
      %v170 = vld [vmem:[%s161] sm:$0xff]
      %v171 = vld [vmem:[%s157] sm:$0xff]
      %v172 = vpack.c.bf16 %v170, %v170
      %v173 = vld [vmem:[%s1] sm:$0xf]
      %v174 = vld [vmem:[%s1 + $0x4] sm:$0xf]
      %v175 = vld [vmem:[%s1 + $0x8] sm:$0xf]
      %v176 = vld [vmem:[%s1 + $0xc] sm:$0xf]
      %v181 = vunpack.c.l.b16 %v173
      %v182 = vunpack.c.l.b16 %v174
      %v183 = vunpack.c.l.b16 %v175
      %v184 = vunpack.c.l.b16 %v176
      %v185 = vpack.c.b16 %v182, %v181
      %v186 = vpack.c.b16 %v184, %v183
      %vm189 = vcmask 261120
      %v191 = vsel %vm189, %v172, 0
      %193 = vmatprep.subr.bf16.mxu0 0
      %194 = vmatpush1.bf16.msra.mxu0 %v185
      %195 = vmatprep.subr.bf16.mxu0 0
      %196 = vmatpush1.bf16.msra.mxu0 %v186
      %197 = vmatprep.subr.bf16.mxu0 0
      %198 = vmatpush1.bf16.msra.mxu0 0
      %199 = vmatprep.subr.bf16.mxu0 0
      %200 = vmatpush1.bf16.msra.mxu0 0
      %201 = vmatprep.subr.bf16.mxu0 0
      %202 = vmatpush1.bf16.msra.mxu0 0
      %203 = vmatprep.subr.bf16.mxu0 0
      %204 = vmatpush1.bf16.msra.mxu0 0
      %205 = vmatprep.subr.bf16.mxu0 0
      %206 = vmatpush1.bf16.msra.mxu0 0
      %207 = vmatprep.subr.bf16.mxu0 0
      %208 = vmatpush1.bf16.msra.mxu0 0
      %209 = vmatprep.subr.bf16.mxu0 0
      %210 = vmatpush1.bf16.msra.mxu0 0
      %211 = vmatprep.subr.bf16.mxu0 0
      %212 = vmatpush1.bf16.msra.mxu0 0
      %213 = vmatprep.subr.bf16.mxu0 0
      %214 = vmatpush1.bf16.msra.mxu0 0
      %215 = vmatprep.subr.bf16.mxu0 0
      %216 = vmatpush1.bf16.msra.mxu0 0
      %217 = vmatprep.subr.bf16.mxu0 0
      %218 = vmatpush1.bf16.msra.mxu0 0
      %219 = vmatprep.subr.bf16.mxu0 0
      %220 = vmatpush1.bf16.msra.mxu0 0
      %221 = vmatprep.subr.bf16.mxu0 0
      %222 = vmatpush1.bf16.msra.mxu0 0
      %223 = vmatprep.subr.bf16.mxu0 0
      %224 = vmatpush1.bf16.msra.mxu0 0
      %225 = vmatprep.mubr.bf16.mxu0 0
      %226 = vmatmul.mubr.bf16.gmra.mrb[0].mxu0 %v191
      %v227 = vpop.f32.mrb[0].mxu0
      %v228 = vadd.f32 0.0, %v227
      %v229 = vpop.f32.mrb[0].mxu0
      %v230 = vpop.f32.mrb[0].mxu0
      %v231 = vpop.f32.mrb[0].mxu0
      %232 = vdwg.mxu0
      %v233 = vadd.f32 %v171, %v228
      %v234 = vmul.f32 %v233, 0.5
      %v235 = vtanh.pop %v234
      %v236 = vadd.f32 %v235, 1.0
      %v237 = vmul.f32 %v236, 0.5
      %v238 = vtanh.pop %v233
      %v239 = vld [vmem:[#allocation2] sm:$0xff]
      %241 = vrot.lane.b32.xlu0 %v239, 32
      %v242 = vpop.permute.xlu0 %241
      %v244 = vmul.f32 %v237, %v242
      %246 = vrot.lane.b32.xlu0 %v238, 64
      %v247 = vpop.permute.xlu0 %246
      %v249 = vmul.f32 %v237, %v247
      %251 = vrot.lane.b32.xlu0 %v249, 32
      %v252 = vpop.permute.xlu0 %251
      %v254 = vadd.f32 %v244, %v252
      %256 = vrot.lane.b32.xlu0 %v254, 96
      %v257 = vpop.permute.xlu0 %256
      %259 = vst.msk [vmem:[#allocation2] sm:$0xff] %vm189, %v257
      %v260 = vtanh.pop %v254
      %262 = vrot.lane.b32.xlu0 %v260, 64
      %v263 = vpop.permute.xlu0 %262
      %v265 = vmul.f32 %v237, %v263
      %267 = vrot.lane.b32.xlu0 %v265, 32
      %v268 = vpop.permute.xlu0 %267
      %270 = vst.msk [vmem:[%s161] sm:$0xff] %vm189, %v268
      %p271 = scmp.lt.s32.totalorder %s17, 0
      %s272 = scalar_select %p271, %s17, 0
      %s273 = smul.addr %s272, 8
      %s274 = scalar_lea.vmem %s2, %s273
      // Predicated region
      $region33: #{lstm_model_forward.4} parent=27 // pred_check
        %p275 = pneg %p92
      $region34: #{lstm_model_forward.4} parent=27 // pred_check_branch
        %277 = sbr.rel (%p275) target = $region36
      $region35: #{lstm_model_forward.4} parent=27 // pred_region
        _
      $region36: #{lstm_model_forward.4} parent=27 // pred_fallthru
        _
      // Predicated region
      $region37: #{lstm_model_forward.4} parent=27 // pred_check
        %p278 = pneg %p92
      $region38: #{lstm_model_forward.4} parent=27 // pred_check_branch
        %280 = sbr.rel (%p278) target = $region40
      $region39: #{lstm_model_forward.4} parent=27 // pred_region
        %p281 = scmp.lt.s32.totalorder %s17, 0
        %s282 = scalar_select %p281, %s17, 0
        %s283 = smul.addr %s282, 8
        %s284 = scalar_lea.vmem %s2, %s283
      $region40: #{lstm_model_forward.4} parent=27 // pred_fallthru
        _
    $region28: #{lstm_model_forward.4} parent=5 // pred_fallthru
      _
    %p285 = scmp.le.s32.totalorder 2, %s8
    // Predicated region
    $region41: #{lstm_model_forward.4} parent=5 // pred_check
      %p286 = pneg %p285
    $region42: #{lstm_model_forward.4} parent=5 // pred_check_branch
      %288 = sbr.rel (%p286) target = $region44
    $region43: #{lstm_model_forward.4} parent=5 // pred_region
      %s289 = ssub.s32 %s8, 2
    $region44: #{lstm_model_forward.4} parent=5 // pred_fallthru
      _
  $region6: #{lstm_model_forward.4} parent=0 // loop_footer
    %s12 = sadd.s32 1, %s8
  $region7: #{lstm_model_forward.4} parent=0 // loop_footer_branch
    %7 = sbr.rel target = $region3
  $region8: #{lstm_model_forward.4} parent=0 // loop_exit
    _

// kernel: lstm_model_forward.5
$region0: #{lstm_model_forward.5}
  #allocation0 [shape = 'u32[]', space=smem, size = 0x4, offset = 0x4, fixed_abs, tag = 'smem constant byte address 0x4 - core index']
  #allocation1 [shape = 'u32[144,128]{1,0:T(1,128)}', space=vmem, size = 0x12000, scoped, tag = 'internal scratch']
  #allocation2 [shape = 'f32[1,1]{1,0:T(1,128)S(1)}', space=vmem, size = 0x200, scoped, tag = 'scoped memory for lstm_model_forward.5']
  #allocation3 [shape = 'f32[1,1]{1,0:T(1,128)S(1)}', space=vmem, size = 0x200, scoped, tag = 'scoped memory for lstm_model_forward.5']
  %s0 = inlined_call_operand.vmem [shape: bf16[8,32], index: 0, kind: input, shape index: {}]
  %s1 = inlined_call_operand.vmem [shape: bf16[8,16], index: 1, kind: input, shape index: {}]
  %s2 = inlined_call_operand.vmem [shape: bf16[8,8], index: 2, kind: input, shape index: {}]
  %s3 = inlined_call_operand.vmem [shape: f32[8,1], index: 3, kind: input, shape index: {}]
  %s4 = inlined_call_operand.vmem [shape: f32[8,2], index: 4, kind: input, shape index: {}]
  %s5 = inlined_call_operand.vmem [shape: f32[2,8], index: 5, kind: input, shape index: {}]
  %s6 = inlined_call_operand.vmem [shape: bf16[32,32], index: 6, kind: input, shape index: {}]
  %s7 = inlined_call_operand.vmem [shape: f32[1,32], index: 7, kind: input, shape index: {}]
  %s8 = inlined_call_operand.vmem [shape: bf16[32,32], index: 8, kind: input, shape index: {}]
  %s9 = inlined_call_operand.vmem [shape: f32[1,32], index: 9, kind: input, shape index: {}]
  %s10 = inlined_call_operand.vmem [shape: bf16[16,32], index: 10, kind: input, shape index: {}]
  %s11 = inlined_call_operand.vmem [shape: bf16[8,32], index: 11, kind: input, shape index: {}]
  %s12 = inlined_call_operand.vmem [shape: bf16[32,32], index: 12, kind: input, shape index: {}]
  %s13 = inlined_call_operand.vmem [shape: f32[1,32], index: 13, kind: input, shape index: {}]
  %s14 = inlined_call_operand.vmem [shape: bf16[32,1], index: 14, kind: input, shape index: {}]
  %s15 = inlined_call_operand.<no memory space> [shape: f32[1,1], index: 15, kind: input, shape index: {}]
  %s16 = inlined_call_operand.vmem [shape: bf16[32,1], index: 16, kind: input, shape index: {}]
  %s17 = inlined_call_operand.<no memory space> [shape: f32[1,1], index: 17, kind: input, shape index: {}]
  %s18 = inlined_call_operand.vmem [shape: f32[2,1], index: 18, kind: output, shape index: {}]
  %s19 = sld [smem:[#allocation0]]
  $region82: #{lstm_model_forward.5} parent=0
    _
  %s21 = ssub.s32 1, %s19
  %s22 = scalar_select 0, %s21, %s19
  %v23 = vstv %s15
  %24 = vst [vmem:[#allocation2] sm:$0x1] %v23
  %v25 = vstv %s17
  %26 = vst [vmem:[#allocation3] sm:$0x1] %v25
  // Predicated region
  $region2: #{lstm_model_forward.5} parent=0 // pred_check
    _
  $region3: #{lstm_model_forward.5} parent=0 // pred_check_branch
    %28 = sbr.rel (0) target = $region5
  $region4: #{lstm_model_forward.5} parent=0 // pred_region
    _
  $region5: #{lstm_model_forward.5} parent=0 // pred_fallthru
    _
  // Predicated region
  $region6: #{lstm_model_forward.5} parent=0 // pred_check
    _
  $region7: #{lstm_model_forward.5} parent=0 // pred_check_branch
    %30 = sbr.rel (0) target = $region9
  $region8: #{lstm_model_forward.5} parent=0 // pred_region
    _
  $region9: #{lstm_model_forward.5} parent=0 // pred_fallthru
    _
  // Predicated region
  $region10: #{lstm_model_forward.5} parent=0 // pred_check
    _
  $region11: #{lstm_model_forward.5} parent=0 // pred_check_branch
    %32 = sbr.rel (0) target = $region13
  $region12: #{lstm_model_forward.5} parent=0 // pred_region
    _
  $region13: #{lstm_model_forward.5} parent=0 // pred_fallthru
    _
  // Predicated region
  $region14: #{lstm_model_forward.5} parent=0 // pred_check
    _
  $region15: #{lstm_model_forward.5} parent=0 // pred_check_branch
    %34 = sbr.rel (0) target = $region17
  $region16: #{lstm_model_forward.5} parent=0 // pred_region
    _
  $region17: #{lstm_model_forward.5} parent=0 // pred_fallthru
    _
  // Predicated region
  $region18: #{lstm_model_forward.5} parent=0 // pred_check
    _
  $region19: #{lstm_model_forward.5} parent=0 // pred_check_branch
    %36 = sbr.rel (0) target = $region21
  $region20: #{lstm_model_forward.5} parent=0 // pred_region
    _
  $region21: #{lstm_model_forward.5} parent=0 // pred_fallthru
    _
  // Predicated region
  $region22: #{lstm_model_forward.5} parent=0 // pred_check
    _
  $region23: #{lstm_model_forward.5} parent=0 // pred_check_branch
    %38 = sbr.rel (0) target = $region25
  $region24: #{lstm_model_forward.5} parent=0 // pred_region
    _
  $region25: #{lstm_model_forward.5} parent=0 // pred_fallthru
    _
  // Predicated region
  $region26: #{lstm_model_forward.5} parent=0 // pred_check
    _
  $region27: #{lstm_model_forward.5} parent=0 // pred_check_branch
    %40 = sbr.rel (0) target = $region29
  $region28: #{lstm_model_forward.5} parent=0 // pred_region
    _
  $region29: #{lstm_model_forward.5} parent=0 // pred_fallthru
    _
  // Predicated region
  $region30: #{lstm_model_forward.5} parent=0 // pred_check
    _
  $region31: #{lstm_model_forward.5} parent=0 // pred_check_branch
    %42 = sbr.rel (0) target = $region33
  $region32: #{lstm_model_forward.5} parent=0 // pred_region
    _
  $region33: #{lstm_model_forward.5} parent=0 // pred_fallthru
    _
  // Predicated region
  $region34: #{lstm_model_forward.5} parent=0 // pred_check
    _
  $region35: #{lstm_model_forward.5} parent=0 // pred_check_branch
    %44 = sbr.rel (0) target = $region37
  $region36: #{lstm_model_forward.5} parent=0 // pred_region
    _
  $region37: #{lstm_model_forward.5} parent=0 // pred_fallthru
    _
  // Predicated region
  $region38: #{lstm_model_forward.5} parent=0 // pred_check
    _
  $region39: #{lstm_model_forward.5} parent=0 // pred_check_branch
    %46 = sbr.rel (0) target = $region41
  $region40: #{lstm_model_forward.5} parent=0 // pred_region
    _
  $region41: #{lstm_model_forward.5} parent=0 // pred_fallthru
    _
  // Predicated region
  $region42: #{lstm_model_forward.5} parent=0 // pred_check
    _
  $region43: #{lstm_model_forward.5} parent=0 // pred_check_branch
    %48 = sbr.rel (0) target = $region45
  $region44: #{lstm_model_forward.5} parent=0 // pred_region
    _
  $region45: #{lstm_model_forward.5} parent=0 // pred_fallthru
    _
  // Predicated region
  $region46: #{lstm_model_forward.5} parent=0 // pred_check
    _
  $region47: #{lstm_model_forward.5} parent=0 // pred_check_branch
    %50 = sbr.rel (0) target = $region49
  $region48: #{lstm_model_forward.5} parent=0 // pred_region
    _
  $region49: #{lstm_model_forward.5} parent=0 // pred_fallthru
    _
  // Predicated region
  $region50: #{lstm_model_forward.5} parent=0 // pred_check
    _
  $region51: #{lstm_model_forward.5} parent=0 // pred_check_branch
    %52 = sbr.rel (0) target = $region53
  $region52: #{lstm_model_forward.5} parent=0 // pred_region
    _
  $region53: #{lstm_model_forward.5} parent=0 // pred_fallthru
    _
  // Predicated region
  $region54: #{lstm_model_forward.5} parent=0 // pred_check
    _
  $region55: #{lstm_model_forward.5} parent=0 // pred_check_branch
    %54 = sbr.rel (0) target = $region57
  $region56: #{lstm_model_forward.5} parent=0 // pred_region
    _
  $region57: #{lstm_model_forward.5} parent=0 // pred_fallthru
    _
  // Predicated region
  $region58: #{lstm_model_forward.5} parent=0 // pred_check
    _
  $region59: #{lstm_model_forward.5} parent=0 // pred_check_branch
    %56 = sbr.rel (0) target = $region61
  $region60: #{lstm_model_forward.5} parent=0 // pred_region
    _
  $region61: #{lstm_model_forward.5} parent=0 // pred_fallthru
    _
  // Predicated region
  $region62: #{lstm_model_forward.5} parent=0 // pred_check
    _
  $region63: #{lstm_model_forward.5} parent=0 // pred_check_branch
    %58 = sbr.rel (0) target = $region65
  $region64: #{lstm_model_forward.5} parent=0 // pred_region
    _
  $region65: #{lstm_model_forward.5} parent=0 // pred_fallthru
    _
  // Predicated region
  $region66: #{lstm_model_forward.5} parent=0 // pred_check
    _
  $region67: #{lstm_model_forward.5} parent=0 // pred_check_branch
    %60 = sbr.rel (0) target = $region69
  $region68: #{lstm_model_forward.5} parent=0 // pred_region
    _
  $region69: #{lstm_model_forward.5} parent=0 // pred_fallthru
    _
  // Predicated region
  $region70: #{lstm_model_forward.5} parent=0 // pred_check
    _
  $region71: #{lstm_model_forward.5} parent=0 // pred_check_branch
    %62 = sbr.rel (0) target = $region73
  $region72: #{lstm_model_forward.5} parent=0 // pred_region
    _
  $region73: #{lstm_model_forward.5} parent=0 // pred_fallthru
    _
  %v64 = vld [vmem:[%s0] sm:$0xf]
  %v65 = vld [vmem:[%s1] sm:$0xf]
  %v66 = vld [vmem:[%s2] sm:$0xf]
  %v67 = vld [vmem:[%s3] sm:$0xff]
  %v68 = vld [vmem:[%s4] sm:$0xff]
  %v69 = vld [vmem:[%s5] sm:$0x3]
  %v70 = vld [vmem:[%s6] sm:$0xf]
  %v71 = vld [vmem:[%s6 + $0x4] sm:$0xf]
  %v72 = vld [vmem:[%s6 + $0x8] sm:$0xf]
  %v73 = vld [vmem:[%s6 + $0xc] sm:$0xf]
  %v74 = vld [vmem:[%s7] sm:$0x1]
  %v76 = vlaneseq
  %v77 = vshrl.u32 %v76, 7
  %v78 = vsub.s32 0, %v77
  %v79 = vrot.slane %v74, %v78
  %v85 = vunpack.c.l.b16 %v70
  %v86 = vunpack.c.l.b16 %v71
  %v87 = vunpack.c.l.b16 %v72
  %v88 = vunpack.c.l.b16 %v73
  %v89 = vpack.c.b16 %v86, %v85
  %v90 = vpack.c.b16 %v88, %v87
  %vm93 = vcmask 261120
  %v95 = vsel %vm93, %v64, 0
  %97 = vmatprep.subr.bf16.mxu0 0
  %98 = vmatpush1.bf16.msra.mxu0 %v89
  %99 = vmatprep.subr.bf16.mxu0 0
  %100 = vmatpush1.bf16.msra.mxu0 %v90
  %101 = vmatprep.subr.bf16.mxu0 0
  %102 = vmatpush1.bf16.msra.mxu0 0
  %103 = vmatprep.subr.bf16.mxu0 0
  %104 = vmatpush1.bf16.msra.mxu0 0
  %105 = vmatprep.subr.bf16.mxu0 0
  %106 = vmatpush1.bf16.msra.mxu0 0
  %107 = vmatprep.subr.bf16.mxu0 0
  %108 = vmatpush1.bf16.msra.mxu0 0
  %109 = vmatprep.subr.bf16.mxu0 0
  %110 = vmatpush1.bf16.msra.mxu0 0
  %111 = vmatprep.subr.bf16.mxu0 0
  %112 = vmatpush1.bf16.msra.mxu0 0
  %113 = vmatprep.subr.bf16.mxu0 0
  %114 = vmatpush1.bf16.msra.mxu0 0
  %115 = vmatprep.subr.bf16.mxu0 0
  %116 = vmatpush1.bf16.msra.mxu0 0
  %117 = vmatprep.subr.bf16.mxu0 0
  %118 = vmatpush1.bf16.msra.mxu0 0
  %119 = vmatprep.subr.bf16.mxu0 0
  %120 = vmatpush1.bf16.msra.mxu0 0
  %121 = vmatprep.subr.bf16.mxu0 0
  %122 = vmatpush1.bf16.msra.mxu0 0
  %123 = vmatprep.subr.bf16.mxu0 0
  %124 = vmatpush1.bf16.msra.mxu0 0
  %125 = vmatprep.subr.bf16.mxu0 0
  %126 = vmatpush1.bf16.msra.mxu0 0
  %127 = vmatprep.subr.bf16.mxu0 0
  %128 = vmatpush1.bf16.msra.mxu0 0
  %129 = vmatprep.mubr.bf16.mxu0 0
  %130 = vmatmul.mubr.bf16.gmra.mrb[0].mxu0 %v95
  %v131 = vpop.f32.mrb[0].mxu0
  %v132 = vadd.f32 %v79, %v131
  %v133 = vpop.f32.mrb[0].mxu0
  %v134 = vpop.f32.mrb[0].mxu0
  %v135 = vpop.f32.mrb[0].mxu0
  %136 = vdwg.mxu0
  %v137 = vmax.f32 %v132, 0.0
  %v138 = vpack.c.bf16 %v137, %v137
  %v139 = vld [vmem:[%s8] sm:$0xf]
  %v140 = vld [vmem:[%s8 + $0x4] sm:$0xf]
  %v141 = vld [vmem:[%s8 + $0x8] sm:$0xf]
  %v142 = vld [vmem:[%s8 + $0xc] sm:$0xf]
  %v143 = vld [vmem:[%s9] sm:$0x1]
  %v145 = vlaneseq
  %v146 = vshrl.u32 %v145, 7
  %v147 = vsub.s32 0, %v146
  %v148 = vrot.slane %v143, %v147
  %v154 = vunpack.c.l.b16 %v139
  %v155 = vunpack.c.l.b16 %v140
  %v156 = vunpack.c.l.b16 %v141
  %v157 = vunpack.c.l.b16 %v142
  %v158 = vpack.c.b16 %v155, %v154
  %v159 = vpack.c.b16 %v157, %v156
  %v163 = vsel %vm93, %v138, 0
  %165 = vmatprep.subr.bf16.mxu0 0
  %166 = vmatpush1.bf16.msra.mxu0 %v158
  %167 = vmatprep.subr.bf16.mxu0 0
  %168 = vmatpush1.bf16.msra.mxu0 %v159
  %169 = vmatprep.subr.bf16.mxu0 0
  %170 = vmatpush1.bf16.msra.mxu0 0
  %171 = vmatprep.subr.bf16.mxu0 0
  %172 = vmatpush1.bf16.msra.mxu0 0
  %173 = vmatprep.subr.bf16.mxu0 0
  %174 = vmatpush1.bf16.msra.mxu0 0
  %175 = vmatprep.subr.bf16.mxu0 0
  %176 = vmatpush1.bf16.msra.mxu0 0
  %177 = vmatprep.subr.bf16.mxu0 0
  %178 = vmatpush1.bf16.msra.mxu0 0
  %179 = vmatprep.subr.bf16.mxu0 0
  %180 = vmatpush1.bf16.msra.mxu0 0
  %181 = vmatprep.subr.bf16.mxu0 0
  %182 = vmatpush1.bf16.msra.mxu0 0
  %183 = vmatprep.subr.bf16.mxu0 0
  %184 = vmatpush1.bf16.msra.mxu0 0
  %185 = vmatprep.subr.bf16.mxu0 0
  %186 = vmatpush1.bf16.msra.mxu0 0
  %187 = vmatprep.subr.bf16.mxu0 0
  %188 = vmatpush1.bf16.msra.mxu0 0
  %189 = vmatprep.subr.bf16.mxu0 0
  %190 = vmatpush1.bf16.msra.mxu0 0
  %191 = vmatprep.subr.bf16.mxu0 0
  %192 = vmatpush1.bf16.msra.mxu0 0
  %193 = vmatprep.subr.bf16.mxu0 0
  %194 = vmatpush1.bf16.msra.mxu0 0
  %195 = vmatprep.subr.bf16.mxu0 0
  %196 = vmatpush1.bf16.msra.mxu0 0
  %197 = vmatprep.mubr.bf16.mxu0 0
  %198 = vmatmul.mubr.bf16.gmra.mrb[0].mxu0 %v163
  %v199 = vpop.f32.mrb[0].mxu0
  %v200 = vadd.f32 %v148, %v199
  %v201 = vpop.f32.mrb[0].mxu0
  %v202 = vpop.f32.mrb[0].mxu0
  %v203 = vpop.f32.mrb[0].mxu0
  %204 = vdwg.mxu0
  %v205 = vmax.f32 %v200, 0.0
  %v206 = vld [vmem:[%s10] sm:$0xf]
  %v207 = vld [vmem:[%s10 + $0x4] sm:$0xf]
  %v208 = vld [vmem:[%s11] sm:$0xf]
  %vm209 = vcmask 64512
  %v211 = vsel %vm209, %v66, 0
  %vm213 = vcmask 1043456
  %v215 = vsel %vm213, %v208, 0
  %217 = vmatprep.subr.bf16.mxu0 0
  %218 = vmatpush1.bf16.msra.mxu0 %v215
  %219 = vmatprep.subr.bf16.mxu0 0
  %220 = vmatpush1.bf16.msra.mxu0 0
  %221 = vmatprep.subr.bf16.mxu0 0
  %222 = vmatpush1.bf16.msra.mxu0 0
  %223 = vmatprep.subr.bf16.mxu0 0
  %224 = vmatpush1.bf16.msra.mxu0 0
  %225 = vmatprep.subr.bf16.mxu0 0
  %226 = vmatpush1.bf16.msra.mxu0 0
  %227 = vmatprep.subr.bf16.mxu0 0
  %228 = vmatpush1.bf16.msra.mxu0 0
  %229 = vmatprep.subr.bf16.mxu0 0
  %230 = vmatpush1.bf16.msra.mxu0 0
  %231 = vmatprep.subr.bf16.mxu0 0
  %232 = vmatpush1.bf16.msra.mxu0 0
  %233 = vmatprep.subr.bf16.mxu0 0
  %234 = vmatpush1.bf16.msra.mxu0 0
  %235 = vmatprep.subr.bf16.mxu0 0
  %236 = vmatpush1.bf16.msra.mxu0 0
  %237 = vmatprep.subr.bf16.mxu0 0
  %238 = vmatpush1.bf16.msra.mxu0 0
  %239 = vmatprep.subr.bf16.mxu0 0
  %240 = vmatpush1.bf16.msra.mxu0 0
  %241 = vmatprep.subr.bf16.mxu0 0
  %242 = vmatpush1.bf16.msra.mxu0 0
  %243 = vmatprep.subr.bf16.mxu0 0
  %244 = vmatpush1.bf16.msra.mxu0 0
  %245 = vmatprep.subr.bf16.mxu0 0
  %246 = vmatpush1.bf16.msra.mxu0 0
  %247 = vmatprep.subr.bf16.mxu0 0
  %248 = vmatpush1.bf16.msra.mxu0 0
  %249 = vmatprep.mubr.bf16.mxu0 0
  %250 = vmatmul.mubr.bf16.gmra.mrb[0].mxu0 %v211
  %v251 = vpop.f32.mrb[0].mxu0
  %v252 = vadd.f32 0.0, %v251
  %v253 = vpop.f32.mrb[0].mxu0
  %v254 = vpop.f32.mrb[0].mxu0
  %v255 = vpop.f32.mrb[0].mxu0
  %256 = vdwg.mxu0
  %v259 = vunpack.c.l.b16 %v206
  %v260 = vunpack.c.l.b16 %v207
  %v261 = vpack.c.b16 %v260, %v259
  %vm263 = vcmask 130048
  %v265 = vsel %vm263, %v65, 0
  %267 = vmatprep.subr.bf16.mxu0 0
  %268 = vmatpush1.bf16.msra.mxu0 %v261
  %269 = vmatprep.subr.bf16.mxu0 0
  %270 = vmatpush1.bf16.msra.mxu0 0
  %271 = vmatprep.subr.bf16.mxu0 0
  %272 = vmatpush1.bf16.msra.mxu0 0
  %273 = vmatprep.subr.bf16.mxu0 0
  %274 = vmatpush1.bf16.msra.mxu0 0
  %275 = vmatprep.subr.bf16.mxu0 0
  %276 = vmatpush1.bf16.msra.mxu0 0
  %277 = vmatprep.subr.bf16.mxu0 0
  %278 = vmatpush1.bf16.msra.mxu0 0
  %279 = vmatprep.subr.bf16.mxu0 0
  %280 = vmatpush1.bf16.msra.mxu0 0
  %281 = vmatprep.subr.bf16.mxu0 0
  %282 = vmatpush1.bf16.msra.mxu0 0
  %283 = vmatprep.subr.bf16.mxu0 0
  %284 = vmatpush1.bf16.msra.mxu0 0
  %285 = vmatprep.subr.bf16.mxu0 0
  %286 = vmatpush1.bf16.msra.mxu0 0
  %287 = vmatprep.subr.bf16.mxu0 0
  %288 = vmatpush1.bf16.msra.mxu0 0
  %289 = vmatprep.subr.bf16.mxu0 0
  %290 = vmatpush1.bf16.msra.mxu0 0
  %291 = vmatprep.subr.bf16.mxu0 0
  %292 = vmatpush1.bf16.msra.mxu0 0
  %293 = vmatprep.subr.bf16.mxu0 0
  %294 = vmatpush1.bf16.msra.mxu0 0
  %295 = vmatprep.subr.bf16.mxu0 0
  %296 = vmatpush1.bf16.msra.mxu0 0
  %297 = vmatprep.subr.bf16.mxu0 0
  %298 = vmatpush1.bf16.msra.mxu0 0
  %299 = vmatprep.mubr.bf16.mxu0 0
  %300 = vmatmul.mubr.bf16.gmra.mrb[0].mxu0 %v265
  %v301 = vpop.f32.mrb[0].mxu0
  %v302 = vadd.f32 %v252, %v301
  %v303 = vpop.f32.mrb[0].mxu0
  %v304 = vpop.f32.mrb[0].mxu0
  %v305 = vpop.f32.mrb[0].mxu0
  %306 = vdwg.mxu0
  %v307 = vld [vmem:[%s12] sm:$0xf]
  %v308 = vld [vmem:[%s12 + $0x4] sm:$0xf]
  %v309 = vld [vmem:[%s12 + $0x8] sm:$0xf]
  %v310 = vld [vmem:[%s12 + $0xc] sm:$0xf]
  %v315 = vunpack.c.l.b16 %v307
  %v316 = vunpack.c.l.b16 %v308
  %v317 = vunpack.c.l.b16 %v309
  %v318 = vunpack.c.l.b16 %v310
  %v319 = vpack.c.b16 %v316, %v315
  %v320 = vpack.c.b16 %v318, %v317
  %323 = vmatprep.subr.bf16.mxu0 0
  %324 = vmatpush1.bf16.msra.mxu0 %v319
  %325 = vmatprep.subr.bf16.mxu0 0
  %326 = vmatpush1.bf16.msra.mxu0 %v320
  %327 = vmatprep.subr.bf16.mxu0 0
  %328 = vmatpush1.bf16.msra.mxu0 0
  %329 = vmatprep.subr.bf16.mxu0 0
  %330 = vmatpush1.bf16.msra.mxu0 0
  %331 = vmatprep.subr.bf16.mxu0 0
  %332 = vmatpush1.bf16.msra.mxu0 0
  %333 = vmatprep.subr.bf16.mxu0 0
  %334 = vmatpush1.bf16.msra.mxu0 0
  %335 = vmatprep.subr.bf16.mxu0 0
  %336 = vmatpush1.bf16.msra.mxu0 0
  %337 = vmatprep.subr.bf16.mxu0 0
  %338 = vmatpush1.bf16.msra.mxu0 0
  %339 = vmatprep.subr.bf16.mxu0 0
  %340 = vmatpush1.bf16.msra.mxu0 0
  %341 = vmatprep.subr.bf16.mxu0 0
  %342 = vmatpush1.bf16.msra.mxu0 0
  %343 = vmatprep.subr.bf16.mxu0 0
  %344 = vmatpush1.bf16.msra.mxu0 0
  %345 = vmatprep.subr.bf16.mxu0 0
  %346 = vmatpush1.bf16.msra.mxu0 0
  %347 = vmatprep.subr.bf16.mxu0 0
  %348 = vmatpush1.bf16.msra.mxu0 0
  %349 = vmatprep.subr.bf16.mxu0 0
  %350 = vmatpush1.bf16.msra.mxu0 0
  %351 = vmatprep.subr.bf16.mxu0 0
  %352 = vmatpush1.bf16.msra.mxu0 0
  %353 = vmatprep.subr.bf16.mxu0 0
  %354 = vmatpush1.bf16.msra.mxu0 0
  %355 = vmatprep.mubr.bf16.mxu0 0
  %356 = vmatmul.mubr.bf16.gmra.mrb[0].mxu0 %v163
  %v357 = vpop.f32.mrb[0].mxu0
  %v358 = vadd.f32 0.0, %v357
  %v359 = vpop.f32.mrb[0].mxu0
  %v360 = vpop.f32.mrb[0].mxu0
  %v361 = vpop.f32.mrb[0].mxu0
  %362 = vdwg.mxu0
  %v363 = vadd.f32 %v302, %v358
  %v364 = vld [vmem:[%s13] sm:$0x1]
  %v366 = vlaneseq
  %v367 = vshrl.u32 %v366, 7
  %v368 = vsub.s32 0, %v367
  %v369 = vrot.slane %v364, %v368
  %v371 = vadd.f32 %v363, %v369
  %v372 = vmax.f32 %v371, 0.0
  %v373 = vpack.c.bf16 %v372, %v372
  %v374 = vld [vmem:[%s14] sm:$0xf]
  %v375 = vld [vmem:[%s14 + $0x4] sm:$0xf]
  %v376 = vld [vmem:[%s14 + $0x8] sm:$0xf]
  %v377 = vld [vmem:[%s14 + $0xc] sm:$0xf]
  %v378 = vld [vmem:[#allocation2] sm:$0x1]
  %v380 = vlaneseq
  %v381 = vshrl.u32 %v380, 7
  %v382 = vsub.s32 0, %v381
  %v383 = vrot.slane %v378, %v382
  %v389 = vunpack.c.l.b16 %v374
  %v390 = vunpack.c.l.b16 %v375
  %v391 = vunpack.c.l.b16 %v376
  %v392 = vunpack.c.l.b16 %v377
  %v393 = vpack.c.b16 %v390, %v389
  %v394 = vpack.c.b16 %v392, %v391
  %v398 = vsel %vm93, %v373, 0
  %400 = vmatprep.subr.bf16.mxu0 0
  %401 = vmatpush1.bf16.msra.mxu0 %v393
  %402 = vmatprep.subr.bf16.mxu0 0
  %403 = vmatpush1.bf16.msra.mxu0 %v394
  %404 = vmatprep.subr.bf16.mxu0 0
  %405 = vmatpush1.bf16.msra.mxu0 0
  %406 = vmatprep.subr.bf16.mxu0 0
  %407 = vmatpush1.bf16.msra.mxu0 0
  %408 = vmatprep.subr.bf16.mxu0 0
  %409 = vmatpush1.bf16.msra.mxu0 0
  %410 = vmatprep.subr.bf16.mxu0 0
  %411 = vmatpush1.bf16.msra.mxu0 0
  %412 = vmatprep.subr.bf16.mxu0 0
  %413 = vmatpush1.bf16.msra.mxu0 0
  %414 = vmatprep.subr.bf16.mxu0 0
  %415 = vmatpush1.bf16.msra.mxu0 0
  %416 = vmatprep.subr.bf16.mxu0 0
  %417 = vmatpush1.bf16.msra.mxu0 0
  %418 = vmatprep.subr.bf16.mxu0 0
  %419 = vmatpush1.bf16.msra.mxu0 0
  %420 = vmatprep.subr.bf16.mxu0 0
  %421 = vmatpush1.bf16.msra.mxu0 0
  %422 = vmatprep.subr.bf16.mxu0 0
  %423 = vmatpush1.bf16.msra.mxu0 0
  %424 = vmatprep.subr.bf16.mxu0 0
  %425 = vmatpush1.bf16.msra.mxu0 0
  %426 = vmatprep.subr.bf16.mxu0 0
  %427 = vmatpush1.bf16.msra.mxu0 0
  %428 = vmatprep.subr.bf16.mxu0 0
  %429 = vmatpush1.bf16.msra.mxu0 0
  %430 = vmatprep.subr.bf16.mxu0 0
  %431 = vmatpush1.bf16.msra.mxu0 0
  %432 = vmatprep.mubr.bf16.mxu0 0
  %433 = vmatmul.mubr.bf16.gmra.mrb[0].mxu0 %v398
  %v434 = vpop.f32.mrb[0].mxu0
  %v435 = vadd.f32 %v383, %v434
  %v436 = vpop.f32.mrb[0].mxu0
  %v437 = vpop.f32.mrb[0].mxu0
  %v438 = vpop.f32.mrb[0].mxu0
  %439 = vdwg.mxu0
  %v440 = vsub.f32 1.0, %v67
  %v441 = vmul.f32 %v440, -100000.0
  %v442 = vadd.f32 %v435, %v441
  %vm443 = vcmask 7168
  %v444 = vsel %vm443, %v442, -inf
  %v445 = vrot.slane %v444, 4
  %v446 = vmax.f32 %v444, %v445
  %v447 = vrot.slane %v446, 2
  %v448 = vmax.f32 %v446, %v447
  %v449 = vrot.slane %v448, 1
  %v450 = vmax.f32 %v448, %v449
  %v451 = vsub.f32 %v442, %v450
  %v452 = vmul.f32 %v451, 1.442695
  %v453 = vpow.pop %v452
  %v455 = vsel %vm209, %v69, 0
  %457 = vmatprep.subr.mxu0 0.0
  %458 = vmatpush1.msra.mxu0 %v453
  %459 = vmatprep.subr.mxu0 0.0
  %460 = vmatpush1.msra.mxu0 0.0
  %461 = vmatprep.subr.mxu0 0.0
  %462 = vmatpush1.msra.mxu0 0.0
  %463 = vmatprep.subr.mxu0 0.0
  %464 = vmatpush1.msra.mxu0 0.0
  %465 = vmatprep.subr.mxu0 0.0
  %466 = vmatpush1.msra.mxu0 0.0
  %467 = vmatprep.subr.mxu0 0.0
  %468 = vmatpush1.msra.mxu0 0.0
  %469 = vmatprep.subr.mxu0 0.0
  %470 = vmatpush1.msra.mxu0 0.0
  %471 = vmatprep.subr.mxu0 0.0
  %472 = vmatpush1.msra.mxu0 0.0
  %473 = vmatprep.subr.mxu0 0.0
  %474 = vmatpush1.msra.mxu0 0.0
  %475 = vmatprep.subr.mxu0 0.0
  %476 = vmatpush1.msra.mxu0 0.0
  %477 = vmatprep.subr.mxu0 0.0
  %478 = vmatpush1.msra.mxu0 0.0
  %479 = vmatprep.subr.mxu0 0.0
  %480 = vmatpush1.msra.mxu0 0.0
  %481 = vmatprep.subr.mxu0 0.0
  %482 = vmatpush1.msra.mxu0 0.0
  %483 = vmatprep.subr.mxu0 0.0
  %484 = vmatpush1.msra.mxu0 0.0
  %485 = vmatprep.subr.mxu0 0.0
  %486 = vmatpush1.msra.mxu0 0.0
  %487 = vmatprep.subr.mxu0 0.0
  %488 = vmatpush1.msra.mxu0 0.0
  %489 = vmatprep.subr.mxu0 0.0
  %490 = vmatpush1.msra.mxu0 0.0
  %491 = vmatprep.subr.mxu0 0.0
  %492 = vmatpush1.msra.mxu0 0.0
  %493 = vmatprep.subr.mxu0 0.0
  %494 = vmatpush1.msra.mxu0 0.0
  %495 = vmatprep.subr.mxu0 0.0
  %496 = vmatpush1.msra.mxu0 0.0
  %497 = vmatprep.subr.mxu0 0.0
  %498 = vmatpush1.msra.mxu0 0.0
  %499 = vmatprep.subr.mxu0 0.0
  %500 = vmatpush1.msra.mxu0 0.0
  %501 = vmatprep.subr.mxu0 0.0
  %502 = vmatpush1.msra.mxu0 0.0
  %503 = vmatprep.subr.mxu0 0.0
  %504 = vmatpush1.msra.mxu0 0.0
  %505 = vmatprep.subr.mxu0 0.0
  %506 = vmatpush1.msra.mxu0 0.0
  %507 = vmatprep.subr.mxu0 0.0
  %508 = vmatpush1.msra.mxu0 0.0
  %509 = vmatprep.subr.mxu0 0.0
  %510 = vmatpush1.msra.mxu0 0.0
  %511 = vmatprep.subr.mxu0 0.0
  %512 = vmatpush1.msra.mxu0 0.0
  %513 = vmatprep.subr.mxu0 0.0
  %514 = vmatpush1.msra.mxu0 0.0
  %515 = vmatprep.subr.mxu0 0.0
  %516 = vmatpush1.msra.mxu0 0.0
  %517 = vmatprep.subr.mxu0 0.0
  %518 = vmatpush1.msra.mxu0 0.0
  %519 = vmatprep.subr.mxu0 0.0
  %520 = vmatpush1.msra.mxu0 0.0
  %521 = vmatprep.mubr.f32.mxu0 0.0
  %522 = vmatmul.mubr.f32.gmra.mrb[0].mxu0 %v455
  %v523 = vpop.f32.mrb[0].mxu0
  %v524 = vadd.f32 0.0, %v523
  %v525 = vpop.f32.mrb[0].mxu0
  %526 = vdwg.mxu0
  %vm527 = vcmask 15360
  %v529 = vsel %vm527, %v68, 0
  %vm531 = vcmask 1041408
  %v533 = vsel %vm531, %v524, 0
  %535 = vmatprep.subr.mxu0 0.0
  %536 = vmatpush1.msra.mxu0 %v533
  %537 = vmatprep.subr.mxu0 0.0
  %538 = vmatpush1.msra.mxu0 0.0
  %539 = vmatprep.subr.mxu0 0.0
  %540 = vmatpush1.msra.mxu0 0.0
  %541 = vmatprep.subr.mxu0 0.0
  %542 = vmatpush1.msra.mxu0 0.0
  %543 = vmatprep.subr.mxu0 0.0
  %544 = vmatpush1.msra.mxu0 0.0
  %545 = vmatprep.subr.mxu0 0.0
  %546 = vmatpush1.msra.mxu0 0.0
  %547 = vmatprep.subr.mxu0 0.0
  %548 = vmatpush1.msra.mxu0 0.0
  %549 = vmatprep.subr.mxu0 0.0
  %550 = vmatpush1.msra.mxu0 0.0
  %551 = vmatprep.subr.mxu0 0.0
  %552 = vmatpush1.msra.mxu0 0.0
  %553 = vmatprep.subr.mxu0 0.0
  %554 = vmatpush1.msra.mxu0 0.0
  %555 = vmatprep.subr.mxu0 0.0
  %556 = vmatpush1.msra.mxu0 0.0
  %557 = vmatprep.subr.mxu0 0.0
  %558 = vmatpush1.msra.mxu0 0.0
  %559 = vmatprep.subr.mxu0 0.0
  %560 = vmatpush1.msra.mxu0 0.0
  %561 = vmatprep.subr.mxu0 0.0
  %562 = vmatpush1.msra.mxu0 0.0
  %563 = vmatprep.subr.mxu0 0.0
  %564 = vmatpush1.msra.mxu0 0.0
  %565 = vmatprep.subr.mxu0 0.0
  %566 = vmatpush1.msra.mxu0 0.0
  %567 = vmatprep.subr.mxu0 0.0
  %568 = vmatpush1.msra.mxu0 0.0
  %569 = vmatprep.subr.mxu0 0.0
  %570 = vmatpush1.msra.mxu0 0.0
  %571 = vmatprep.subr.mxu0 0.0
  %572 = vmatpush1.msra.mxu0 0.0
  %573 = vmatprep.subr.mxu0 0.0
  %574 = vmatpush1.msra.mxu0 0.0
  %575 = vmatprep.subr.mxu0 0.0
  %576 = vmatpush1.msra.mxu0 0.0
  %577 = vmatprep.subr.mxu0 0.0
  %578 = vmatpush1.msra.mxu0 0.0
  %579 = vmatprep.subr.mxu0 0.0
  %580 = vmatpush1.msra.mxu0 0.0
  %581 = vmatprep.subr.mxu0 0.0
  %582 = vmatpush1.msra.mxu0 0.0
  %583 = vmatprep.subr.mxu0 0.0
  %584 = vmatpush1.msra.mxu0 0.0
  %585 = vmatprep.subr.mxu0 0.0
  %586 = vmatpush1.msra.mxu0 0.0
  %587 = vmatprep.subr.mxu0 0.0
  %588 = vmatpush1.msra.mxu0 0.0
  %589 = vmatprep.subr.mxu0 0.0
  %590 = vmatpush1.msra.mxu0 0.0
  %591 = vmatprep.subr.mxu0 0.0
  %592 = vmatpush1.msra.mxu0 0.0
  %593 = vmatprep.subr.mxu0 0.0
  %594 = vmatpush1.msra.mxu0 0.0
  %595 = vmatprep.subr.mxu0 0.0
  %596 = vmatpush1.msra.mxu0 0.0
  %597 = vmatprep.subr.mxu0 0.0
  %598 = vmatpush1.msra.mxu0 0.0
  %599 = vmatprep.mubr.f32.mxu0 0.0
  %600 = vmatmul.mubr.f32.gmra.mrb[0].mxu0 %v529
  %v601 = vpop.f32.mrb[0].mxu0
  %v602 = vadd.f32 0.0, %v601
  %v603 = vpop.f32.mrb[0].mxu0
  %604 = vdwg.mxu0
  %v605 = vrcp.pop %v602
  %v606 = vmul.f32 %v453, %v605
  %608 = vset.pattern.permute.xlu0 0
  %609 = vperm.xlu0 %608, %v606
  %v610 = vpop.permute.xlu0 %609
  %v612 = vmul.f32 %v205, %v610
  %613 = vmatprep.subr.mxu0 0.0
  %614 = vmatpush1.msra.mxu0 %v612
  %615 = vmatprep.subr.mxu0 0.0
  %616 = vmatpush1.msra.mxu0 0.0
  %617 = vmatprep.subr.mxu0 0.0
  %618 = vmatpush1.msra.mxu0 0.0
  %619 = vmatprep.subr.mxu0 0.0
  %620 = vmatpush1.msra.mxu0 0.0
  %621 = vmatprep.subr.mxu0 0.0
  %622 = vmatpush1.msra.mxu0 0.0
  %623 = vmatprep.subr.mxu0 0.0
  %624 = vmatpush1.msra.mxu0 0.0
  %625 = vmatprep.subr.mxu0 0.0
  %626 = vmatpush1.msra.mxu0 0.0
  %627 = vmatprep.subr.mxu0 0.0
  %628 = vmatpush1.msra.mxu0 0.0
  %629 = vmatprep.subr.mxu0 0.0
  %630 = vmatpush1.msra.mxu0 0.0
  %631 = vmatprep.subr.mxu0 0.0
  %632 = vmatpush1.msra.mxu0 0.0
  %633 = vmatprep.subr.mxu0 0.0
  %634 = vmatpush1.msra.mxu0 0.0
  %635 = vmatprep.subr.mxu0 0.0
  %636 = vmatpush1.msra.mxu0 0.0
  %637 = vmatprep.subr.mxu0 0.0
  %638 = vmatpush1.msra.mxu0 0.0
  %639 = vmatprep.subr.mxu0 0.0
  %640 = vmatpush1.msra.mxu0 0.0
  %641 = vmatprep.subr.mxu0 0.0
  %642 = vmatpush1.msra.mxu0 0.0
  %643 = vmatprep.subr.mxu0 0.0
  %644 = vmatpush1.msra.mxu0 0.0
  %645 = vmatprep.subr.mxu0 0.0
  %646 = vmatpush1.msra.mxu0 0.0
  %647 = vmatprep.subr.mxu0 0.0
  %648 = vmatpush1.msra.mxu0 0.0
  %649 = vmatprep.subr.mxu0 0.0
  %650 = vmatpush1.msra.mxu0 0.0
  %651 = vmatprep.subr.mxu0 0.0
  %652 = vmatpush1.msra.mxu0 0.0
  %653 = vmatprep.subr.mxu0 0.0
  %654 = vmatpush1.msra.mxu0 0.0
  %655 = vmatprep.subr.mxu0 0.0
  %656 = vmatpush1.msra.mxu0 0.0
  %657 = vmatprep.subr.mxu0 0.0
  %658 = vmatpush1.msra.mxu0 0.0
  %659 = vmatprep.subr.mxu0 0.0
  %660 = vmatpush1.msra.mxu0 0.0
  %661 = vmatprep.subr.mxu0 0.0
  %662 = vmatpush1.msra.mxu0 0.0
  %663 = vmatprep.subr.mxu0 0.0
  %664 = vmatpush1.msra.mxu0 0.0
  %665 = vmatprep.subr.mxu0 0.0
  %666 = vmatpush1.msra.mxu0 0.0
  %667 = vmatprep.subr.mxu0 0.0
  %668 = vmatpush1.msra.mxu0 0.0
  %669 = vmatprep.subr.mxu0 0.0
  %670 = vmatpush1.msra.mxu0 0.0
  %671 = vmatprep.subr.mxu0 0.0
  %672 = vmatpush1.msra.mxu0 0.0
  %673 = vmatprep.subr.mxu0 0.0
  %674 = vmatpush1.msra.mxu0 0.0
  %675 = vmatprep.subr.mxu0 0.0
  %676 = vmatpush1.msra.mxu0 0.0
  %677 = vmatprep.mubr.f32.mxu0 0.0
  %678 = vmatmul.mubr.f32.gmra.mrb[0].mxu0 %v455
  %v679 = vpop.f32.mrb[0].mxu0
  %v680 = vadd.f32 0.0, %v679
  %v681 = vpop.f32.mrb[0].mxu0
  %682 = vdwg.mxu0
  %v683 = vpack.c.bf16 %v680, %v680
  %v684 = vld [vmem:[%s16] sm:$0xf]
  %v685 = vld [vmem:[%s16 + $0x4] sm:$0xf]
  %v686 = vld [vmem:[%s16 + $0x8] sm:$0xf]
  %v687 = vld [vmem:[%s16 + $0xc] sm:$0xf]
  %v688 = vld [vmem:[#allocation3] sm:$0x1]
  %v690 = vlaneseq
  %v691 = vshrl.u32 %v690, 7
  %v692 = vsub.s32 0, %v691
  %v693 = vrot.slane %v688, %v692
  %v699 = vunpack.c.l.b16 %v684
  %v700 = vunpack.c.l.b16 %v685
  %v701 = vunpack.c.l.b16 %v686
  %v702 = vunpack.c.l.b16 %v687
  %v703 = vpack.c.b16 %v700, %v699
  %v704 = vpack.c.b16 %v702, %v701
  %v708 = vsel %vm93, %v683, 0
  %710 = vmatprep.subr.bf16.mxu0 0
  %711 = vmatpush1.bf16.msra.mxu0 %v703
  %712 = vmatprep.subr.bf16.mxu0 0
  %713 = vmatpush1.bf16.msra.mxu0 %v704
  %714 = vmatprep.subr.bf16.mxu0 0
  %715 = vmatpush1.bf16.msra.mxu0 0
  %716 = vmatprep.subr.bf16.mxu0 0
  %717 = vmatpush1.bf16.msra.mxu0 0
  %718 = vmatprep.subr.bf16.mxu0 0
  %719 = vmatpush1.bf16.msra.mxu0 0
  %720 = vmatprep.subr.bf16.mxu0 0
  %721 = vmatpush1.bf16.msra.mxu0 0
  %722 = vmatprep.subr.bf16.mxu0 0
  %723 = vmatpush1.bf16.msra.mxu0 0
  %724 = vmatprep.subr.bf16.mxu0 0
  %725 = vmatpush1.bf16.msra.mxu0 0
  %726 = vmatprep.subr.bf16.mxu0 0
  %727 = vmatpush1.bf16.msra.mxu0 0
  %728 = vmatprep.subr.bf16.mxu0 0
  %729 = vmatpush1.bf16.msra.mxu0 0
  %730 = vmatprep.subr.bf16.mxu0 0
  %731 = vmatpush1.bf16.msra.mxu0 0
  %732 = vmatprep.subr.bf16.mxu0 0
  %733 = vmatpush1.bf16.msra.mxu0 0
  %734 = vmatprep.subr.bf16.mxu0 0
  %735 = vmatpush1.bf16.msra.mxu0 0
  %736 = vmatprep.subr.bf16.mxu0 0
  %737 = vmatpush1.bf16.msra.mxu0 0
  %738 = vmatprep.subr.bf16.mxu0 0
  %739 = vmatpush1.bf16.msra.mxu0 0
  %740 = vmatprep.subr.bf16.mxu0 0
  %741 = vmatpush1.bf16.msra.mxu0 0
  %742 = vmatprep.mubr.bf16.mxu0 0
  %743 = vmatmul.mubr.bf16.gmra.mrb[0].mxu0 %v708
  %v744 = vpop.f32.mrb[0].mxu0
  %v745 = vadd.f32 %v693, %v744
  %v746 = vpop.f32.mrb[0].mxu0
  %v747 = vpop.f32.mrb[0].mxu0
  %v748 = vpop.f32.mrb[0].mxu0
  %749 = vdwg.mxu0
  %v750 = vmul.f32 %v745, 0.5
  %v751 = vtanh.pop %v750
  %v752 = vadd.f32 %v751, 1.0
  %v753 = vmul.f32 %v752, 0.5
  %vm754 = vcmask 1024
  %755 = vst.msk [vmem:[%s18] sm:$0x3] %vm754, %v753
  // Predicated region
  $region74: #{lstm_model_forward.5} parent=0 // pred_check
    _
  $region75: #{lstm_model_forward.5} parent=0 // pred_check_branch
    %757 = sbr.rel (0) target = $region77
  $region76: #{lstm_model_forward.5} parent=0 // pred_region
    _
  $region77: #{lstm_model_forward.5} parent=0 // pred_fallthru
    _
  // Predicated region
  $region78: #{lstm_model_forward.5} parent=0 // pred_check
    _
  $region79: #{lstm_model_forward.5} parent=0 // pred_check_branch
    %759 = sbr.rel (0) target = $region81
  $region80: #{lstm_model_forward.5} parent=0 // pred_region
    _
  $region81: #{lstm_model_forward.5} parent=0 // pred_fallthru
    _

</llo_original>
